<compile_context>
chip_gen: v5e
topology: v5e:2x2
jax: 0.10.0
libtpu: 0.0.40
codegen_flags: <defaults>
</compile_context>

<pallas_src>
import functools

import jax
import jax.numpy as jnp
from jax import lax
from jax.experimental import pallas as pl
from jax.experimental.pallas import tpu as pltpu


def _round_up(x, m):
    return ((x + m - 1) // m) * m


# ----------------------------------------------------------------------------
# Fused kernel: a stack of stride-1 "same"-padded convs (+ fused ReLU) for Bt
# batch elements per grid step, entirely on-chip.
#
# Canvas layout: channels on sublanes, zero-padded spatial plane flattened on
# lanes with row stride Wcs; activation(h, w) lives at lane O + h*Wcs + w.
# Conv tap (kh, kw) of a layer with pad p is the lane window starting at
# O + (kh-p)*Wcs + (kw-p).
# ----------------------------------------------------------------------------
def _fused_gconv_kernel(x_ref, valid_ref, *refs,
                        kernel_sizes, cin_list, relu_flags,
                        Wcs, O, L_acc, Bt, n_canvas):
    n_layers = len(kernel_sizes)
    w_refs = refs[:n_layers]
    o_ref = refs[n_layers]
    rhs_ref = refs[n_layers + 1]
    canvases = refs[n_layers + 2:]

    # Halo lanes of the intermediate canvases are read as "same"-padding zeros but
    # never written by the per-layer interior store; refresh them every step
    # (cheap vs. the im2col traffic, and robust however the batch axis is sharded).
    for c in canvases:
        c[...] = jnp.zeros_like(c)

    if n_layers > 1:
        valid = valid_ref[...]                                   # (1, L_acc) f32

    for i in range(n_layers):
        K = kernel_sizes[i]
        Cin = cin_list[i]
        p = (K - 1) // 2
        kkc = K * K * Cin
        src = x_ref if i == 0 else canvases[(i - 1) % n_canvas]

        # 1) im2col into VMEM scratch: one (Cin, L_acc) copy per (batch, tap);
        #    stores land at sublane-aligned rows / lane-aligned batch columns.
        for b in range(Bt):
            for kh in range(K):
                for kw in range(K):
                    t = kh * K + kw
                    off = O + (kh - p) * Wcs + (kw - p)
                    rhs_ref[t * Cin:(t + 1) * Cin,
                            b * L_acc:(b + 1) * L_acc] = (
                        src[b, 0:Cin, off:off + L_acc])

        # 2) ONE wide-contraction MXU matmul per layer (bf16 x bf16 -> f32 acc).
        acc = jnp.dot(w_refs[i][...], rhs_ref[0:kkc, :],
                      preferred_element_type=jnp.float32)        # (Cout_pad, Bt*L_acc)

        # 3) epilogue on the f32 accumulator only.
        if relu_flags[i]:
            acc = jnp.maximum(acc, 0.0)

        if i + 1 < n_layers:
            # Single hand-off store per (layer, batch): zero the padding lanes and
            # drop the block at the fixed interior offset of the next canvas.
            dst = canvases[i % n_canvas]
            cpad = acc.shape[0]
            for b in range(Bt):
                blk = acc[:, b * L_acc:(b + 1) * L_acc] * valid
                dst[b, 0:cpad, O:O + L_acc] = blk.astype(dst.dtype)
        else:
            for b in range(Bt):
                o_ref[b] = acc[:, b * L_acc:(b + 1) * L_acc].astype(o_ref.dtype)


def fused_gconv_stack(x_nchw, w_flats, kernel_sizes, relu_flags, cout_last,
                      compute_dtype=jnp.bfloat16):
    """Run a stack of stride-1 same-padded convs (+ReLU) in ONE pallas_call."""
    N, C0, H, W = x_nchw.shape
    n_layers = len(w_flats)
    cin_list = [w.shape[1] // (k * k) for w, k in zip(w_flats, kernel_sizes)]
    assert cin_list[0] == C0, (cin_list, C0)

    pads_lo = [(k - 1) // 2 for k in kernel_sizes]
    pads_hi = [k - 1 - p for k, p in zip(kernel_sizes, pads_lo)]
    pmax_lo, pmax_hi = max(pads_lo), max(pads_hi)

    # Canvas row stride: minimum W + pmax keeps the inter-row gap zero-valued so a
    # tap can run past a row edge and read "same" padding.  Lane-tile align when
    # the lane waste is small so kh-offsets become whole 128-lane steps.
    Wcs = W + max(pmax_lo, pmax_hi)
    if _round_up(Wcs, 128) * 3 <= Wcs * 4:      # <= 33% extra lanes
        Wcs = _round_up(Wcs, 128)

    L_acc = _round_up(H * Wcs, 128)             # matmul N width per batch element
    O = pmax_lo * (Wcs + 1)                     # fixed interior offset, all layers
    Lc = _round_up(O + pmax_hi * (Wcs + 1) + L_acc, 128)

    # Batch blocking: Bt elements per grid step, keeping >= 2 grid steps.
    Bt = 1
    for cand in (4, 2):
        if N % cand == 0 and N // cand >= 2:
            Bt = cand
            break
    grid = (N // Bt,)

    # Embed the network input once into its canvas (zeros act as "same" padding).
    xc = jnp.pad(x_nchw, ((0, 0), (0, 0), (0, 0), (0, Wcs - W)))
    xc = xc.reshape(N, C0, H * Wcs)
    xc = jnp.pad(xc, ((0, 0), (0, 0), (O, Lc - O - H * Wcs)))
    xc = xc.astype(compute_dtype)

    # Mask of valid output lanes p = h*Wcs + w  (h < H, w < W); f32 (VPU-friendly).
    lanes = jnp.arange(L_acc)
    valid = (((lanes // Wcs) < H) & ((lanes % Wcs) < W))
    valid = valid.astype(jnp.float32).reshape(1, L_acc)

    w_flats = [w.astype(compute_dtype) for w in w_flats]
    cout_pad_last = w_flats[-1].shape[0]
    kkc_max = max(k * k * c for k, c in zip(kernel_sizes, cin_list))
    n_canvas = min(max(n_layers - 1, 0), 2)
    cmax_scr = max(w.shape[0] for w in w_flats[:-1]) if n_layers > 1 else 0

    kern = functools.partial(
        _fused_gconv_kernel,
        kernel_sizes=tuple(kernel_sizes), cin_list=tuple(cin_list),
        relu_flags=tuple(relu_flags),
        Wcs=Wcs, O=O, L_acc=L_acc, Bt=Bt, n_canvas=max(n_canvas, 1))

    in_specs = [pl.BlockSpec((Bt, C0, Lc), lambda n: (n, 0, 0)),
                pl.BlockSpec((1, L_acc), lambda n: (0, 0))]
    in_specs += [pl.BlockSpec(w.shape, lambda n: (0, 0)) for w in w_flats]

    scratch_shapes = [pltpu.VMEM((kkc_max, Bt * L_acc), compute_dtype)]
    scratch_shapes += [pltpu.VMEM((Bt, cmax_scr, Lc), compute_dtype)
                       for _ in range(n_canvas)]

    flops = 2 * N * L_acc * sum(w.shape[0] * w.shape[1] for w in w_flats)
    bytes_accessed = (xc.size * xc.dtype.itemsize
                      + valid.size * 4
                      + sum(w.size * w.dtype.itemsize for w in w_flats)
                      + N * cout_pad_last * L_acc * 4)

    # TODO(synk): for very large (post-upsample) feature maps add a spatial row-
    # tiling grid axis with halos; for v7x use pltpu.CORE_PARALLEL on that axis.
    out = pl.pallas_call(
        kern,
        out_shape=jax.ShapeDtypeStruct((N, cout_pad_last, L_acc), jnp.float32),
        grid_spec=pltpu.PrefetchScalarGridSpec(
            num_scalar_prefetch=0,
            grid=grid,
            in_specs=in_specs,
            out_specs=pl.BlockSpec((Bt, cout_pad_last, L_acc),
                                   lambda n: (n, 0, 0)),
            scratch_shapes=scratch_shapes),
        compiler_params=pltpu.CompilerParams(
            dimension_semantics=("parallel",),
            vmem_limit_bytes=32 * 1024 * 1024),   # explicit budget (v7x-safe)
        cost_estimate=pl.CostEstimate(flops=flops, transcendentals=0,
                                      bytes_accessed=bytes_accessed),
    )(xc, valid, *w_flats)

    # Un-embed: lane p = h*Wcs + w -> (N, Cout, H, W); drop the Cout padding rows.
    y = out[:, :cout_last, :H * Wcs].reshape(N, cout_last, H, Wcs)
    return y[:, :, :, :W]


# ----------------------------------------------------------------------------
# Deterministic C4-equivariant weight construction (parameter setup / glue).
# ----------------------------------------------------------------------------
def c4_regular_to_regular(base):
    """base: (Co, Ci, G, K, K) -> full conv weight (Co*G, Ci*G, K, K) (OIHW)."""
    Co, Ci, G, K, _ = base.shape
    blocks = []
    for r in range(G):
        shifted = jnp.roll(base, shift=r, axis=2)       # cycle the group axis
        rotated = jnp.rot90(shifted, k=r, axes=(3, 4))  # rotate spatial taps
        blocks.append(rotated)
    w = jnp.stack(blocks, axis=1)                       # (Co, G_out, Ci, G_in, K, K)
    return w.reshape(Co * G, Ci * G, K, K)


def c4_regular_to_trivial(base, G):
    """base: (Co, Ci, K, K) -> full conv weight (Co, Ci*G, K, K) (OIHW)."""
    Co, Ci, K, _ = base.shape
    blocks = [jnp.rot90(base, k=s, axes=(2, 3)) for s in range(G)]
    w = jnp.stack(blocks, axis=2)                       # (Co, Ci, G_in, K, K)
    return w.reshape(Co, Ci * G, K, K)


# ----------------------------------------------------------------------------
# The module.
# ----------------------------------------------------------------------------
class GConvTransposeNN:
    """JAX/Pallas port of GConvTransposeNN (fiber_group='rot_2d', use_bias=False,
    activation=ReLU, out_activation=None, padding_mode='constant')."""

    def __init__(self, in_channels, out_channels, kernel_size, stride=1,
                 n_rot=4, key=None, compute_dtype=jnp.bfloat16):
        assert isinstance(in_channels, int)
        assert isinstance(out_channels, list)
        self.in_channels = [in_channels] + out_channels[:-1]
        self.out_channels = out_channels
        self.num_layers = len(out_channels)
        if isinstance(kernel_size, int):
            kernel_size = [kernel_size] * self.num_layers
        if isinstance(stride, int):
            stride = [stride] * self.num_layers
        self.kernel_size = kernel_size
        self.stride = stride
        self.n_rot = n_rot
        self.compute_dtype = compute_dtype

        key = key if key is not None else jax.random.PRNGKey(0)
        self.weights_oihw = []   # dense conv weights (OIHW), f32 master copy
        self.weights_flat = []   # (Cout_pad8, K*K*Cin), tap-major, zero-row padded
        self.cout_full = []      # true Cout per layer (for output un-padding)
        for i in range(self.num_layers):
            key, sub = jax.random.split(key)
            K = self.kernel_size[i]
            ci, co = self.in_channels[i], self.out_channels[i]
            if i < self.num_layers - 1:
                # regular -> regular field
                base = 0.1 * jax.random.normal(sub, (co, ci, n_rot, K, K),
                                               jnp.float32)
                w_oihw = c4_regular_to_regular(base)
            else:
                # regular -> trivial field (last layer)
                base = 0.1 * jax.random.normal(sub, (co, ci, K, K), jnp.float32)
                w_oihw = c4_regular_to_trivial(base, n_rot)
            self.weights_oihw.append(w_oihw)
            co_full, ci_full = w_oihw.shape[0], w_oihw.shape[1]
            co_pad = ((co_full + 7) // 8) * 8
            wf = jnp.transpose(w_oihw, (0, 2, 3, 1)).reshape(co_full,
                                                             K * K * ci_full)
            wf = jnp.pad(wf, ((0, co_pad - co_full), (0, 0)))
            self.weights_flat.append(wf)
            self.cout_full.append(co_full)

    def __call__(self, x_nchw):
        """NCHW in / NCHW out (PyTorch convention); no layout transposes needed."""
        y = x_nchw
        i = 0
        while i < self.num_layers:
            if self.stride[i] > 1:
                # TODO(synk): R2Upsampling(bilinear) runs as jax.image.resize glue
                # outside the Pallas kernel (align_corners semantics not matched).
                N, C, H, W = y.shape
                s = self.stride[i]
                y = jax.image.resize(y, (N, C, H * s, W * s), method='bilinear')
            # Fuse the maximal run of consecutive stride-1 layers into one kernel.
            j = i + 1
            while j < self.num_layers and self.stride[j] == 1:
                j += 1
            y = fused_gconv_stack(
                y,
                self.weights_flat[i:j],
                self.kernel_size[i:j],
                [k < self.num_layers - 1 for k in range(i, j)],
                cout_last=self.cout_full[j - 1],
                compute_dtype=self.compute_dtype)
            i = j
        return y


# ----------------------------------------------------------------------------
# Plain-JAX reference (numerical sanity check).  Emulates the kernel's bf16
# operand / bf16 inter-layer activation rounding, accumulating in f32.
# ----------------------------------------------------------------------------
def _ref_forward(model, x_nchw):
    cd = model.compute_dtype

    def rnd(a):
        return a.astype(cd).astype(jnp.float32)

    y = x_nchw
    for i in range(model.num_layers):
        if model.stride[i] > 1:
            N, C, H, W = y.shape
            s = model.stride[i]
            y = jax.image.resize(y, (N, C, H * s, W * s), method='bilinear')
        K = model.kernel_size[i]
        pb = (K - 1) // 2
        pe = K - 1 - pb
        y = lax.conv_general_dilated(
            rnd(y), rnd(model.weights_oihw[i]), window_strides=(1, 1),
            padding=[(pb, pe), (pb, pe)],
            dimension_numbers=('NCHW', 'OIHW', 'NCHW'),
            precision=lax.Precision.HIGHEST)
        if i < model.num_layers - 1:
            y = jnp.maximum(y, 0.0)
    return y


if __name__ == "__main__":
    key = jax.random.PRNGKey(0)
    k_model, k_x = jax.random.split(key)

    in_channels = 4          # regular fields
    out_channels = [4, 4]    # last layer -> 4 trivial (scalar) output channels
    n_rot = 4
    model = GConvTransposeNN(in_channels, out_channels, kernel_size=3,
                             stride=1, n_rot=n_rot, key=k_model)

    # NCHW input: C = in_channels * n_rot = 16 (regular representation fibers).
    # Batch 4 -> Bt=2 batch-blocked grid of 2 steps.
    x = jax.random.normal(k_x, (4, in_channels * n_rot, 16, 16), jnp.float32)

    out = jax.block_until_ready(model(x))
    assert out.shape == (4, out_channels[-1], 16, 16), out.shape

    ref = jax.block_until_ready(_ref_forward(model, x))
    err = float(jnp.max(jnp.abs(out - ref)))
    assert jnp.allclose(out, ref, atol=1e-2, rtol=1e-2), f"mismatch, max err {err}"

    print("KERNEL_OK")
</pallas_src>

<mosaic_0001>
module attributes {stable_mosaic.version = 11 : i64} {
  func.func @_fused_gconv_kernel(%arg0: i32, %arg1: memref<2x16x512xbf16, #tpu.memory_space<vmem>>, %arg2: memref<1x384xf32, #tpu.memory_space<vmem>>, %arg3: memref<16x144xbf16, #tpu.memory_space<vmem>>, %arg4: memref<8x144xbf16, #tpu.memory_space<vmem>>, %arg5: memref<2x8x384xf32, #tpu.memory_space<vmem>>, %arg6: memref<144x768xbf16, #tpu.memory_space<vmem>>, %arg7: memref<2x16x512xbf16, #tpu.memory_space<vmem>>) attributes {dimension_semantics = [#tpu.dimension_semantics<parallel>], iteration_bounds = array<i64: 2>, scalar_prefetch = 0 : i64, scratch_operands = 2 : i64, tpu.core_type = #tpu.core_type<tc>, window_params = [{transform_indices = @transform_0, window_bounds = array<i64: 2, 16, 512>}, {pipeline_mode = #tpu.pipeline_mode<synchronous>, transform_indices = @transform_1, window_bounds = array<i64: 1, 384>}, {pipeline_mode = #tpu.pipeline_mode<synchronous>, transform_indices = @transform_2, window_bounds = array<i64: 16, 144>}, {pipeline_mode = #tpu.pipeline_mode<synchronous>, transform_indices = @transform_3, window_bounds = array<i64: 8, 144>}, {transform_indices = @transform_4, window_bounds = array<i64: 2, 8, 384>}]} {
    %cst = arith.constant 0.000000e+00 : bf16
    %0 = vector.broadcast %cst : bf16 to vector<2x16x512xbf16>
    %c0 = arith.constant 0 : index
    %c0_0 = arith.constant 0 : index
    %c0_1 = arith.constant 0 : index
    %1 = vector.load %arg7[%c0, %c0_0, %c0_1] : memref<2x16x512xbf16, #tpu.memory_space<vmem>>, vector<2x16x512xbf16>
    tpu.vector_store %arg7[%c0, %c0_0, %c0_1], %0 {strides = array<i32>} : memref<2x16x512xbf16, #tpu.memory_space<vmem>>, vector<2x16x512xbf16>,
    %c0_2 = arith.constant 0 : index
    %c0_3 = arith.constant 0 : index
    %2 = vector.load %arg2[%c0_2, %c0_3] : memref<1x384xf32, #tpu.memory_space<vmem>>, vector<1x384xf32>
    %c0_4 = arith.constant 0 : index
    %c0_5 = arith.constant 0 : index
    %c0_6 = arith.constant 0 : index
    %3 = vector.load %arg1[%c0_4, %c0_5, %c0_6] : memref<2x16x512xbf16, #tpu.memory_space<vmem>>, vector<1x16x384xbf16>
    %4 = vector.shape_cast %3 : vector<1x16x384xbf16> to vector<16x384xbf16>
    %c0_7 = arith.constant 0 : index
    %c0_8 = arith.constant 0 : index
    %5 = vector.load %arg6[%c0_7, %c0_8] : memref<144x768xbf16, #tpu.memory_space<vmem>>, vector<16x384xbf16>
    tpu.vector_store %arg6[%c0_7, %c0_8], %4 {strides = array<i32>} : memref<144x768xbf16, #tpu.memory_space<vmem>>, vector<16x384xbf16>,
    %c0_9 = arith.constant 0 : index
    %c0_10 = arith.constant 0 : index
    %c1 = arith.constant 1 : index
    %6 = vector.load %arg1[%c0_9, %c0_10, %c1] : memref<2x16x512xbf16, #tpu.memory_space<vmem>>, vector<1x16x384xbf16>
    %7 = vector.shape_cast %6 : vector<1x16x384xbf16> to vector<16x384xbf16>
    %c16 = arith.constant 16 : index
    %c0_11 = arith.constant 0 : index
    %8 = vector.load %arg6[%c16, %c0_11] : memref<144x768xbf16, #tpu.memory_space<vmem>>, vector<16x384xbf16>
    tpu.vector_store %arg6[%c16, %c0_11], %7 {strides = array<i32>} : memref<144x768xbf16, #tpu.memory_space<vmem>>, vector<16x384xbf16>,
    %c0_12 = arith.constant 0 : index
    %c0_13 = arith.constant 0 : index
    %c2 = arith.constant 2 : index
    %9 = vector.load %arg1[%c0_12, %c0_13, %c2] : memref<2x16x512xbf16, #tpu.memory_space<vmem>>, vector<1x16x384xbf16>
    %10 = vector.shape_cast %9 : vector<1x16x384xbf16> to vector<16x384xbf16>
    %c32 = arith.constant 32 : index
    %c0_14 = arith.constant 0 : index
    %11 = vector.load %arg6[%c32, %c0_14] : memref<144x768xbf16, #tpu.memory_space<vmem>>, vector<16x384xbf16>
    tpu.vector_store %arg6[%c32, %c0_14], %10 {strides = array<i32>} : memref<144x768xbf16, #tpu.memory_space<vmem>>, vector<16x384xbf16>,
    %c0_15 = arith.constant 0 : index
    %c0_16 = arith.constant 0 : index
    %c17 = arith.constant 17 : index
    %12 = vector.load %arg1[%c0_15, %c0_16, %c17] : memref<2x16x512xbf16, #tpu.memory_space<vmem>>, vector<1x16x384xbf16>
    %13 = vector.shape_cast %12 : vector<1x16x384xbf16> to vector<16x384xbf16>
    %c48 = arith.constant 48 : index
    %c0_17 = arith.constant 0 : index
    %14 = vector.load %arg6[%c48, %c0_17] : memref<144x768xbf16, #tpu.memory_space<vmem>>, vector<16x384xbf16>
    tpu.vector_store %arg6[%c48, %c0_17], %13 {strides = array<i32>} : memref<144x768xbf16, #tpu.memory_space<vmem>>, vector<16x384xbf16>,
    %c0_18 = arith.constant 0 : index
    %c0_19 = arith.constant 0 : index
    %c18 = arith.constant 18 : index
    %15 = vector.load %arg1[%c0_18, %c0_19, %c18] : memref<2x16x512xbf16, #tpu.memory_space<vmem>>, vector<1x16x384xbf16>
    %16 = vector.shape_cast %15 : vector<1x16x384xbf16> to vector<16x384xbf16>
    %c64 = arith.constant 64 : index
    %c0_20 = arith.constant 0 : index
    %17 = vector.load %arg6[%c64, %c0_20] : memref<144x768xbf16, #tpu.memory_space<vmem>>, vector<16x384xbf16>
    tpu.vector_store %arg6[%c64, %c0_20], %16 {strides = array<i32>} : memref<144x768xbf16, #tpu.memory_space<vmem>>, vector<16x384xbf16>,
    %c0_21 = arith.constant 0 : index
    %c0_22 = arith.constant 0 : index
    %c19 = arith.constant 19 : index
    %18 = vector.load %arg1[%c0_21, %c0_22, %c19] : memref<2x16x512xbf16, #tpu.memory_space<vmem>>, vector<1x16x384xbf16>
    %19 = vector.shape_cast %18 : vector<1x16x384xbf16> to vector<16x384xbf16>
    %c80 = arith.constant 80 : index
    %c0_23 = arith.constant 0 : index
    %20 = vector.load %arg6[%c80, %c0_23] : memref<144x768xbf16, #tpu.memory_space<vmem>>, vector<16x384xbf16>
    tpu.vector_store %arg6[%c80, %c0_23], %19 {strides = array<i32>} : memref<144x768xbf16, #tpu.memory_space<vmem>>, vector<16x384xbf16>,
    %c0_24 = arith.constant 0 : index
    %c0_25 = arith.constant 0 : index
    %c34 = arith.constant 34 : index
    %21 = vector.load %arg1[%c0_24, %c0_25, %c34] : memref<2x16x512xbf16, #tpu.memory_space<vmem>>, vector<1x16x384xbf16>
    %22 = vector.shape_cast %21 : vector<1x16x384xbf16> to vector<16x384xbf16>
    %c96 = arith.constant 96 : index
    %c0_26 = arith.constant 0 : index
    %23 = vector.load %arg6[%c96, %c0_26] : memref<144x768xbf16, #tpu.memory_space<vmem>>, vector<16x384xbf16>
    tpu.vector_store %arg6[%c96, %c0_26], %22 {strides = array<i32>} : memref<144x768xbf16, #tpu.memory_space<vmem>>, vector<16x384xbf16>,
    %c0_27 = arith.constant 0 : index
    %c0_28 = arith.constant 0 : index
    %c35 = arith.constant 35 : index
    %24 = vector.load %arg1[%c0_27, %c0_28, %c35] : memref<2x16x512xbf16, #tpu.memory_space<vmem>>, vector<1x16x384xbf16>
    %25 = vector.shape_cast %24 : vector<1x16x384xbf16> to vector<16x384xbf16>
    %c112 = arith.constant 112 : index
    %c0_29 = arith.constant 0 : index
    %26 = vector.load %arg6[%c112, %c0_29] : memref<144x768xbf16, #tpu.memory_space<vmem>>, vector<16x384xbf16>
    tpu.vector_store %arg6[%c112, %c0_29], %25 {strides = array<i32>} : memref<144x768xbf16, #tpu.memory_space<vmem>>, vector<16x384xbf16>,
    %c0_30 = arith.constant 0 : index
    %c0_31 = arith.constant 0 : index
    %c36 = arith.constant 36 : index
    %27 = vector.load %arg1[%c0_30, %c0_31, %c36] : memref<2x16x512xbf16, #tpu.memory_space<vmem>>, vector<1x16x384xbf16>
    %28 = vector.shape_cast %27 : vector<1x16x384xbf16> to vector<16x384xbf16>
    %c128 = arith.constant 128 : index
    %c0_32 = arith.constant 0 : index
    %29 = vector.load %arg6[%c128, %c0_32] : memref<144x768xbf16, #tpu.memory_space<vmem>>, vector<16x384xbf16>
    tpu.vector_store %arg6[%c128, %c0_32], %28 {strides = array<i32>} : memref<144x768xbf16, #tpu.memory_space<vmem>>, vector<16x384xbf16>,
    %c1_33 = arith.constant 1 : index
    %c0_34 = arith.constant 0 : index
    %c0_35 = arith.constant 0 : index
    %30 = vector.load %arg1[%c1_33, %c0_34, %c0_35] : memref<2x16x512xbf16, #tpu.memory_space<vmem>>, vector<1x16x384xbf16>
    %31 = vector.shape_cast %30 : vector<1x16x384xbf16> to vector<16x384xbf16>
    %c0_36 = arith.constant 0 : index
    %c384 = arith.constant 384 : index
    %32 = vector.load %arg6[%c0_36, %c384] : memref<144x768xbf16, #tpu.memory_space<vmem>>, vector<16x384xbf16>
    tpu.vector_store %arg6[%c0_36, %c384], %31 {strides = array<i32>} : memref<144x768xbf16, #tpu.memory_space<vmem>>, vector<16x384xbf16>,
    %c1_37 = arith.constant 1 : index
    %c0_38 = arith.constant 0 : index
    %c1_39 = arith.constant 1 : index
    %33 = vector.load %arg1[%c1_37, %c0_38, %c1_39] : memref<2x16x512xbf16, #tpu.memory_space<vmem>>, vector<1x16x384xbf16>
    %34 = vector.shape_cast %33 : vector<1x16x384xbf16> to vector<16x384xbf16>
    %c16_40 = arith.constant 16 : index
    %c384_41 = arith.constant 384 : index
    %35 = vector.load %arg6[%c16_40, %c384_41] : memref<144x768xbf16, #tpu.memory_space<vmem>>, vector<16x384xbf16>
    tpu.vector_store %arg6[%c16_40, %c384_41], %34 {strides = array<i32>} : memref<144x768xbf16, #tpu.memory_space<vmem>>, vector<16x384xbf16>,
    %c1_42 = arith.constant 1 : index
    %c0_43 = arith.constant 0 : index
    %c2_44 = arith.constant 2 : index
    %36 = vector.load %arg1[%c1_42, %c0_43, %c2_44] : memref<2x16x512xbf16, #tpu.memory_space<vmem>>, vector<1x16x384xbf16>
    %37 = vector.shape_cast %36 : vector<1x16x384xbf16> to vector<16x384xbf16>
    %c32_45 = arith.constant 32 : index
    %c384_46 = arith.constant 384 : index
    %38 = vector.load %arg6[%c32_45, %c384_46] : memref<144x768xbf16, #tpu.memory_space<vmem>>, vector<16x384xbf16>
    tpu.vector_store %arg6[%c32_45, %c384_46], %37 {strides = array<i32>} : memref<144x768xbf16, #tpu.memory_space<vmem>>, vector<16x384xbf16>,
    %c1_47 = arith.constant 1 : index
    %c0_48 = arith.constant 0 : index
    %c17_49 = arith.constant 17 : index
    %39 = vector.load %arg1[%c1_47, %c0_48, %c17_49] : memref<2x16x512xbf16, #tpu.memory_space<vmem>>, vector<1x16x384xbf16>
    %40 = vector.shape_cast %39 : vector<1x16x384xbf16> to vector<16x384xbf16>
    %c48_50 = arith.constant 48 : index
    %c384_51 = arith.constant 384 : index
    %41 = vector.load %arg6[%c48_50, %c384_51] : memref<144x768xbf16, #tpu.memory_space<vmem>>, vector<16x384xbf16>
    tpu.vector_store %arg6[%c48_50, %c384_51], %40 {strides = array<i32>} : memref<144x768xbf16, #tpu.memory_space<vmem>>, vector<16x384xbf16>,
    %c1_52 = arith.constant 1 : index
    %c0_53 = arith.constant 0 : index
    %c18_54 = arith.constant 18 : index
    %42 = vector.load %arg1[%c1_52, %c0_53, %c18_54] : memref<2x16x512xbf16, #tpu.memory_space<vmem>>, vector<1x16x384xbf16>
    %43 = vector.shape_cast %42 : vector<1x16x384xbf16> to vector<16x384xbf16>
    %c64_55 = arith.constant 64 : index
    %c384_56 = arith.constant 384 : index
    %44 = vector.load %arg6[%c64_55, %c384_56] : memref<144x768xbf16, #tpu.memory_space<vmem>>, vector<16x384xbf16>
    tpu.vector_store %arg6[%c64_55, %c384_56], %43 {strides = array<i32>} : memref<144x768xbf16, #tpu.memory_space<vmem>>, vector<16x384xbf16>,
    %c1_57 = arith.constant 1 : index
    %c0_58 = arith.constant 0 : index
    %c19_59 = arith.constant 19 : index
    %45 = vector.load %arg1[%c1_57, %c0_58, %c19_59] : memref<2x16x512xbf16, #tpu.memory_space<vmem>>, vector<1x16x384xbf16>
    %46 = vector.shape_cast %45 : vector<1x16x384xbf16> to vector<16x384xbf16>
    %c80_60 = arith.constant 80 : index
    %c384_61 = arith.constant 384 : index
    %47 = vector.load %arg6[%c80_60, %c384_61] : memref<144x768xbf16, #tpu.memory_space<vmem>>, vector<16x384xbf16>
    tpu.vector_store %arg6[%c80_60, %c384_61], %46 {strides = array<i32>} : memref<144x768xbf16, #tpu.memory_space<vmem>>, vector<16x384xbf16>,
    %c1_62 = arith.constant 1 : index
    %c0_63 = arith.constant 0 : index
    %c34_64 = arith.constant 34 : index
    %48 = vector.load %arg1[%c1_62, %c0_63, %c34_64] : memref<2x16x512xbf16, #tpu.memory_space<vmem>>, vector<1x16x384xbf16>
    %49 = vector.shape_cast %48 : vector<1x16x384xbf16> to vector<16x384xbf16>
    %c96_65 = arith.constant 96 : index
    %c384_66 = arith.constant 384 : index
    %50 = vector.load %arg6[%c96_65, %c384_66] : memref<144x768xbf16, #tpu.memory_space<vmem>>, vector<16x384xbf16>
    tpu.vector_store %arg6[%c96_65, %c384_66], %49 {strides = array<i32>} : memref<144x768xbf16, #tpu.memory_space<vmem>>, vector<16x384xbf16>,
    %c1_67 = arith.constant 1 : index
    %c0_68 = arith.constant 0 : index
    %c35_69 = arith.constant 35 : index
    %51 = vector.load %arg1[%c1_67, %c0_68, %c35_69] : memref<2x16x512xbf16, #tpu.memory_space<vmem>>, vector<1x16x384xbf16>
    %52 = vector.shape_cast %51 : vector<1x16x384xbf16> to vector<16x384xbf16>
    %c112_70 = arith.constant 112 : index
    %c384_71 = arith.constant 384 : index
    %53 = vector.load %arg6[%c112_70, %c384_71] : memref<144x768xbf16, #tpu.memory_space<vmem>>, vector<16x384xbf16>
    tpu.vector_store %arg6[%c112_70, %c384_71], %52 {strides = array<i32>} : memref<144x768xbf16, #tpu.memory_space<vmem>>, vector<16x384xbf16>,
    %c1_72 = arith.constant 1 : index
    %c0_73 = arith.constant 0 : index
    %c36_74 = arith.constant 36 : index
    %54 = vector.load %arg1[%c1_72, %c0_73, %c36_74] : memref<2x16x512xbf16, #tpu.memory_space<vmem>>, vector<1x16x384xbf16>
    %55 = vector.shape_cast %54 : vector<1x16x384xbf16> to vector<16x384xbf16>
    %c128_75 = arith.constant 128 : index
    %c384_76 = arith.constant 384 : index
    %56 = vector.load %arg6[%c128_75, %c384_76] : memref<144x768xbf16, #tpu.memory_space<vmem>>, vector<16x384xbf16>
    tpu.vector_store %arg6[%c128_75, %c384_76], %55 {strides = array<i32>} : memref<144x768xbf16, #tpu.memory_space<vmem>>, vector<16x384xbf16>,
    %c0_77 = arith.constant 0 : index
    %c0_78 = arith.constant 0 : index
    %57 = vector.load %arg3[%c0_77, %c0_78] : memref<16x144xbf16, #tpu.memory_space<vmem>>, vector<16x144xbf16>
    %c0_79 = arith.constant 0 : index
    %c0_80 = arith.constant 0 : index
    %58 = vector.load %arg6[%c0_79, %c0_80] : memref<144x768xbf16, #tpu.memory_space<vmem>>, vector<144x768xbf16>
    %cst_81 = arith.constant dense<0.000000e+00> : vector<16x768xf32>
    %59 = tpu.matmul %57, %58, %cst_81 {dimension_numbers = #tpu.dot_dimension_numbers<[1], [0], [0], [1], [0, 0, 1, 1], [], []>} : vector<16x144xbf16>, vector<144x768xbf16>, vector<16x768xf32> -> vector<16x768xf32>
    %cst_82 = arith.constant 0.000000e+00 : f32
    %60 = vector.broadcast %cst_82 : f32 to vector<16x768xf32>
    %61 = arith.maximumf %59, %60 : vector<16x768xf32>
    %62 = vector.extract_strided_slice %61 {offsets = [0, 0], sizes = [16, 384], strides = [1, 1]} : vector<16x768xf32> to vector<16x384xf32>
    %63 = vector.broadcast %2 : vector<1x384xf32> to vector<16x384xf32>
    %64 = arith.mulf %62, %63 : vector<16x384xf32>
    %65 = arith.truncf %64 : vector<16x384xf32> to vector<16x384xbf16>
    %c0_83 = arith.constant 0 : index
    %c0_84 = arith.constant 0 : index
    %c18_85 = arith.constant 18 : index
    %66 = vector.load %arg7[%c0_83, %c0_84, %c18_85] : memref<2x16x512xbf16, #tpu.memory_space<vmem>>, vector<1x16x384xbf16>
    %67 = vector.shape_cast %66 : vector<1x16x384xbf16> to vector<16x384xbf16>
    %68 = vector.shape_cast %65 : vector<16x384xbf16> to vector<1x16x384xbf16>
    tpu.vector_store %arg7[%c0_83, %c0_84, %c18_85], %68 {strides = array<i32>} : memref<2x16x512xbf16, #tpu.memory_space<vmem>>, vector<1x16x384xbf16>,
    %69 = vector.extract_strided_slice %61 {offsets = [0, 384], sizes = [16, 384], strides = [1, 1]} : vector<16x768xf32> to vector<16x384xf32>
    %70 = vector.broadcast %2 : vector<1x384xf32> to vector<16x384xf32>
    %71 = arith.mulf %69, %70 : vector<16x384xf32>
    %72 = arith.truncf %71 : vector<16x384xf32> to vector<16x384xbf16>
    %c1_86 = arith.constant 1 : index
    %c0_87 = arith.constant 0 : index
    %c18_88 = arith.constant 18 : index
    %73 = vector.load %arg7[%c1_86, %c0_87, %c18_88] : memref<2x16x512xbf16, #tpu.memory_space<vmem>>, vector<1x16x384xbf16>
    %74 = vector.shape_cast %73 : vector<1x16x384xbf16> to vector<16x384xbf16>
    %75 = vector.shape_cast %72 : vector<16x384xbf16> to vector<1x16x384xbf16>
    tpu.vector_store %arg7[%c1_86, %c0_87, %c18_88], %75 {strides = array<i32>} : memref<2x16x512xbf16, #tpu.memory_space<vmem>>, vector<1x16x384xbf16>,
    %c0_89 = arith.constant 0 : index
    %c0_90 = arith.constant 0 : index
    %c0_91 = arith.constant 0 : index
    %76 = vector.load %arg7[%c0_89, %c0_90, %c0_91] : memref<2x16x512xbf16, #tpu.memory_space<vmem>>, vector<1x16x384xbf16>
    %77 = vector.shape_cast %76 : vector<1x16x384xbf16> to vector<16x384xbf16>
    %c0_92 = arith.constant 0 : index
    %c0_93 = arith.constant 0 : index
    %78 = vector.load %arg6[%c0_92, %c0_93] : memref<144x768xbf16, #tpu.memory_space<vmem>>, vector<16x384xbf16>
    tpu.vector_store %arg6[%c0_92, %c0_93], %77 {strides = array<i32>} : memref<144x768xbf16, #tpu.memory_space<vmem>>, vector<16x384xbf16>,
    %c0_94 = arith.constant 0 : index
    %c0_95 = arith.constant 0 : index
    %c1_96 = arith.constant 1 : index
    %79 = vector.load %arg7[%c0_94, %c0_95, %c1_96] : memref<2x16x512xbf16, #tpu.memory_space<vmem>>, vector<1x16x384xbf16>
    %80 = vector.shape_cast %79 : vector<1x16x384xbf16> to vector<16x384xbf16>
    %c16_97 = arith.constant 16 : index
    %c0_98 = arith.constant 0 : index
    %81 = vector.load %arg6[%c16_97, %c0_98] : memref<144x768xbf16, #tpu.memory_space<vmem>>, vector<16x384xbf16>
    tpu.vector_store %arg6[%c16_97, %c0_98], %80 {strides = array<i32>} : memref<144x768xbf16, #tpu.memory_space<vmem>>, vector<16x384xbf16>,
    %c0_99 = arith.constant 0 : index
    %c0_100 = arith.constant 0 : index
    %c2_101 = arith.constant 2 : index
    %82 = vector.load %arg7[%c0_99, %c0_100, %c2_101] : memref<2x16x512xbf16, #tpu.memory_space<vmem>>, vector<1x16x384xbf16>
    %83 = vector.shape_cast %82 : vector<1x16x384xbf16> to vector<16x384xbf16>
    %c32_102 = arith.constant 32 : index
    %c0_103 = arith.constant 0 : index
    %84 = vector.load %arg6[%c32_102, %c0_103] : memref<144x768xbf16, #tpu.memory_space<vmem>>, vector<16x384xbf16>
    tpu.vector_store %arg6[%c32_102, %c0_103], %83 {strides = array<i32>} : memref<144x768xbf16, #tpu.memory_space<vmem>>, vector<16x384xbf16>,
    %c0_104 = arith.constant 0 : index
    %c0_105 = arith.constant 0 : index
    %c17_106 = arith.constant 17 : index
    %85 = vector.load %arg7[%c0_104, %c0_105, %c17_106] : memref<2x16x512xbf16, #tpu.memory_space<vmem>>, vector<1x16x384xbf16>
    %86 = vector.shape_cast %85 : vector<1x16x384xbf16> to vector<16x384xbf16>
    %c48_107 = arith.constant 48 : index
    %c0_108 = arith.constant 0 : index
    %87 = vector.load %arg6[%c48_107, %c0_108] : memref<144x768xbf16, #tpu.memory_space<vmem>>, vector<16x384xbf16>
    tpu.vector_store %arg6[%c48_107, %c0_108], %86 {strides = array<i32>} : memref<144x768xbf16, #tpu.memory_space<vmem>>, vector<16x384xbf16>,
    %c0_109 = arith.constant 0 : index
    %c0_110 = arith.constant 0 : index
    %c18_111 = arith.constant 18 : index
    %88 = vector.load %arg7[%c0_109, %c0_110, %c18_111] : memref<2x16x512xbf16, #tpu.memory_space<vmem>>, vector<1x16x384xbf16>
    %89 = vector.shape_cast %88 : vector<1x16x384xbf16> to vector<16x384xbf16>
    %c64_112 = arith.constant 64 : index
    %c0_113 = arith.constant 0 : index
    %90 = vector.load %arg6[%c64_112, %c0_113] : memref<144x768xbf16, #tpu.memory_space<vmem>>, vector<16x384xbf16>
    tpu.vector_store %arg6[%c64_112, %c0_113], %89 {strides = array<i32>} : memref<144x768xbf16, #tpu.memory_space<vmem>>, vector<16x384xbf16>,
    %c0_114 = arith.constant 0 : index
    %c0_115 = arith.constant 0 : index
    %c19_116 = arith.constant 19 : index
    %91 = vector.load %arg7[%c0_114, %c0_115, %c19_116] : memref<2x16x512xbf16, #tpu.memory_space<vmem>>, vector<1x16x384xbf16>
    %92 = vector.shape_cast %91 : vector<1x16x384xbf16> to vector<16x384xbf16>
    %c80_117 = arith.constant 80 : index
    %c0_118 = arith.constant 0 : index
    %93 = vector.load %arg6[%c80_117, %c0_118] : memref<144x768xbf16, #tpu.memory_space<vmem>>, vector<16x384xbf16>
    tpu.vector_store %arg6[%c80_117, %c0_118], %92 {strides = array<i32>} : memref<144x768xbf16, #tpu.memory_space<vmem>>, vector<16x384xbf16>,
    %c0_119 = arith.constant 0 : index
    %c0_120 = arith.constant 0 : index
    %c34_121 = arith.constant 34 : index
    %94 = vector.load %arg7[%c0_119, %c0_120, %c34_121] : memref<2x16x512xbf16, #tpu.memory_space<vmem>>, vector<1x16x384xbf16>
    %95 = vector.shape_cast %94 : vector<1x16x384xbf16> to vector<16x384xbf16>
    %c96_122 = arith.constant 96 : index
    %c0_123 = arith.constant 0 : index
    %96 = vector.load %arg6[%c96_122, %c0_123] : memref<144x768xbf16, #tpu.memory_space<vmem>>, vector<16x384xbf16>
    tpu.vector_store %arg6[%c96_122, %c0_123], %95 {strides = array<i32>} : memref<144x768xbf16, #tpu.memory_space<vmem>>, vector<16x384xbf16>,
    %c0_124 = arith.constant 0 : index
    %c0_125 = arith.constant 0 : index
    %c35_126 = arith.constant 35 : index
    %97 = vector.load %arg7[%c0_124, %c0_125, %c35_126] : memref<2x16x512xbf16, #tpu.memory_space<vmem>>, vector<1x16x384xbf16>
    %98 = vector.shape_cast %97 : vector<1x16x384xbf16> to vector<16x384xbf16>
    %c112_127 = arith.constant 112 : index
    %c0_128 = arith.constant 0 : index
    %99 = vector.load %arg6[%c112_127, %c0_128] : memref<144x768xbf16, #tpu.memory_space<vmem>>, vector<16x384xbf16>
    tpu.vector_store %arg6[%c112_127, %c0_128], %98 {strides = array<i32>} : memref<144x768xbf16, #tpu.memory_space<vmem>>, vector<16x384xbf16>,
    %c0_129 = arith.constant 0 : index
    %c0_130 = arith.constant 0 : index
    %c36_131 = arith.constant 36 : index
    %100 = vector.load %arg7[%c0_129, %c0_130, %c36_131] : memref<2x16x512xbf16, #tpu.memory_space<vmem>>, vector<1x16x384xbf16>
    %101 = vector.shape_cast %100 : vector<1x16x384xbf16> to vector<16x384xbf16>
    %c128_132 = arith.constant 128 : index
    %c0_133 = arith.constant 0 : index
    %102 = vector.load %arg6[%c128_132, %c0_133] : memref<144x768xbf16, #tpu.memory_space<vmem>>, vector<16x384xbf16>
    tpu.vector_store %arg6[%c128_132, %c0_133], %101 {strides = array<i32>} : memref<144x768xbf16, #tpu.memory_space<vmem>>, vector<16x384xbf16>,
    %c1_134 = arith.constant 1 : index
    %c0_135 = arith.constant 0 : index
    %c0_136 = arith.constant 0 : index
    %103 = vector.load %arg7[%c1_134, %c0_135, %c0_136] : memref<2x16x512xbf16, #tpu.memory_space<vmem>>, vector<1x16x384xbf16>
    %104 = vector.shape_cast %103 : vector<1x16x384xbf16> to vector<16x384xbf16>
    %c0_137 = arith.constant 0 : index
    %c384_138 = arith.constant 384 : index
    %105 = vector.load %arg6[%c0_137, %c384_138] : memref<144x768xbf16, #tpu.memory_space<vmem>>, vector<16x384xbf16>
    tpu.vector_store %arg6[%c0_137, %c384_138], %104 {strides = array<i32>} : memref<144x768xbf16, #tpu.memory_space<vmem>>, vector<16x384xbf16>,
    %c1_139 = arith.constant 1 : index
    %c0_140 = arith.constant 0 : index
    %c1_141 = arith.constant 1 : index
    %106 = vector.load %arg7[%c1_139, %c0_140, %c1_141] : memref<2x16x512xbf16, #tpu.memory_space<vmem>>, vector<1x16x384xbf16>
    %107 = vector.shape_cast %106 : vector<1x16x384xbf16> to vector<16x384xbf16>
    %c16_142 = arith.constant 16 : index
    %c384_143 = arith.constant 384 : index
    %108 = vector.load %arg6[%c16_142, %c384_143] : memref<144x768xbf16, #tpu.memory_space<vmem>>, vector<16x384xbf16>
    tpu.vector_store %arg6[%c16_142, %c384_143], %107 {strides = array<i32>} : memref<144x768xbf16, #tpu.memory_space<vmem>>, vector<16x384xbf16>,
    %c1_144 = arith.constant 1 : index
    %c0_145 = arith.constant 0 : index
    %c2_146 = arith.constant 2 : index
    %109 = vector.load %arg7[%c1_144, %c0_145, %c2_146] : memref<2x16x512xbf16, #tpu.memory_space<vmem>>, vector<1x16x384xbf16>
    %110 = vector.shape_cast %109 : vector<1x16x384xbf16> to vector<16x384xbf16>
    %c32_147 = arith.constant 32 : index
    %c384_148 = arith.constant 384 : index
    %111 = vector.load %arg6[%c32_147, %c384_148] : memref<144x768xbf16, #tpu.memory_space<vmem>>, vector<16x384xbf16>
    tpu.vector_store %arg6[%c32_147, %c384_148], %110 {strides = array<i32>} : memref<144x768xbf16, #tpu.memory_space<vmem>>, vector<16x384xbf16>,
    %c1_149 = arith.constant 1 : index
    %c0_150 = arith.constant 0 : index
    %c17_151 = arith.constant 17 : index
    %112 = vector.load %arg7[%c1_149, %c0_150, %c17_151] : memref<2x16x512xbf16, #tpu.memory_space<vmem>>, vector<1x16x384xbf16>
    %113 = vector.shape_cast %112 : vector<1x16x384xbf16> to vector<16x384xbf16>
    %c48_152 = arith.constant 48 : index
    %c384_153 = arith.constant 384 : index
    %114 = vector.load %arg6[%c48_152, %c384_153] : memref<144x768xbf16, #tpu.memory_space<vmem>>, vector<16x384xbf16>
    tpu.vector_store %arg6[%c48_152, %c384_153], %113 {strides = array<i32>} : memref<144x768xbf16, #tpu.memory_space<vmem>>, vector<16x384xbf16>,
    %c1_154 = arith.constant 1 : index
    %c0_155 = arith.constant 0 : index
    %c18_156 = arith.constant 18 : index
    %115 = vector.load %arg7[%c1_154, %c0_155, %c18_156] : memref<2x16x512xbf16, #tpu.memory_space<vmem>>, vector<1x16x384xbf16>
    %116 = vector.shape_cast %115 : vector<1x16x384xbf16> to vector<16x384xbf16>
    %c64_157 = arith.constant 64 : index
    %c384_158 = arith.constant 384 : index
    %117 = vector.load %arg6[%c64_157, %c384_158] : memref<144x768xbf16, #tpu.memory_space<vmem>>, vector<16x384xbf16>
    tpu.vector_store %arg6[%c64_157, %c384_158], %116 {strides = array<i32>} : memref<144x768xbf16, #tpu.memory_space<vmem>>, vector<16x384xbf16>,
    %c1_159 = arith.constant 1 : index
    %c0_160 = arith.constant 0 : index
    %c19_161 = arith.constant 19 : index
    %118 = vector.load %arg7[%c1_159, %c0_160, %c19_161] : memref<2x16x512xbf16, #tpu.memory_space<vmem>>, vector<1x16x384xbf16>
    %119 = vector.shape_cast %118 : vector<1x16x384xbf16> to vector<16x384xbf16>
    %c80_162 = arith.constant 80 : index
    %c384_163 = arith.constant 384 : index
    %120 = vector.load %arg6[%c80_162, %c384_163] : memref<144x768xbf16, #tpu.memory_space<vmem>>, vector<16x384xbf16>
    tpu.vector_store %arg6[%c80_162, %c384_163], %119 {strides = array<i32>} : memref<144x768xbf16, #tpu.memory_space<vmem>>, vector<16x384xbf16>,
    %c1_164 = arith.constant 1 : index
    %c0_165 = arith.constant 0 : index
    %c34_166 = arith.constant 34 : index
    %121 = vector.load %arg7[%c1_164, %c0_165, %c34_166] : memref<2x16x512xbf16, #tpu.memory_space<vmem>>, vector<1x16x384xbf16>
    %122 = vector.shape_cast %121 : vector<1x16x384xbf16> to vector<16x384xbf16>
    %c96_167 = arith.constant 96 : index
    %c384_168 = arith.constant 384 : index
    %123 = vector.load %arg6[%c96_167, %c384_168] : memref<144x768xbf16, #tpu.memory_space<vmem>>, vector<16x384xbf16>
    tpu.vector_store %arg6[%c96_167, %c384_168], %122 {strides = array<i32>} : memref<144x768xbf16, #tpu.memory_space<vmem>>, vector<16x384xbf16>,
    %c1_169 = arith.constant 1 : index
    %c0_170 = arith.constant 0 : index
    %c35_171 = arith.constant 35 : index
    %124 = vector.load %arg7[%c1_169, %c0_170, %c35_171] : memref<2x16x512xbf16, #tpu.memory_space<vmem>>, vector<1x16x384xbf16>
    %125 = vector.shape_cast %124 : vector<1x16x384xbf16> to vector<16x384xbf16>
    %c112_172 = arith.constant 112 : index
    %c384_173 = arith.constant 384 : index
    %126 = vector.load %arg6[%c112_172, %c384_173] : memref<144x768xbf16, #tpu.memory_space<vmem>>, vector<16x384xbf16>
    tpu.vector_store %arg6[%c112_172, %c384_173], %125 {strides = array<i32>} : memref<144x768xbf16, #tpu.memory_space<vmem>>, vector<16x384xbf16>,
    %c1_174 = arith.constant 1 : index
    %c0_175 = arith.constant 0 : index
    %c36_176 = arith.constant 36 : index
    %127 = vector.load %arg7[%c1_174, %c0_175, %c36_176] : memref<2x16x512xbf16, #tpu.memory_space<vmem>>, vector<1x16x384xbf16>
    %128 = vector.shape_cast %127 : vector<1x16x384xbf16> to vector<16x384xbf16>
    %c128_177 = arith.constant 128 : index
    %c384_178 = arith.constant 384 : index
    %129 = vector.load %arg6[%c128_177, %c384_178] : memref<144x768xbf16, #tpu.memory_space<vmem>>, vector<16x384xbf16>
    tpu.vector_store %arg6[%c128_177, %c384_178], %128 {strides = array<i32>} : memref<144x768xbf16, #tpu.memory_space<vmem>>, vector<16x384xbf16>,
    %c0_179 = arith.constant 0 : index
    %c0_180 = arith.constant 0 : index
    %130 = vector.load %arg4[%c0_179, %c0_180] : memref<8x144xbf16, #tpu.memory_space<vmem>>, vector<8x144xbf16>
    %c0_181 = arith.constant 0 : index
    %c0_182 = arith.constant 0 : index
    %131 = vector.load %arg6[%c0_181, %c0_182] : memref<144x768xbf16, #tpu.memory_space<vmem>>, vector<144x768xbf16>
    %cst_183 = arith.constant dense<0.000000e+00> : vector<8x768xf32>
    %132 = tpu.matmul %130, %131, %cst_183 {dimension_numbers = #tpu.dot_dimension_numbers<[1], [0], [0], [1], [0, 0, 1, 1], [], []>} : vector<8x144xbf16>, vector<144x768xbf16>, vector<8x768xf32> -> vector<8x768xf32>
    %133 = vector.extract_strided_slice %132 {offsets = [0, 0], sizes = [8, 384], strides = [1, 1]} : vector<8x768xf32> to vector<8x384xf32>
    %c0_184 = arith.constant 0 : index
    %c0_185 = arith.constant 0 : index
    %c0_186 = arith.constant 0 : index
    %134 = vector.load %arg5[%c0_184, %c0_185, %c0_186] : memref<2x8x384xf32, #tpu.memory_space<vmem>>, vector<1x8x384xf32>
    %135 = vector.shape_cast %134 : vector<1x8x384xf32> to vector<8x384xf32>
    %136 = vector.shape_cast %133 : vector<8x384xf32> to vector<1x8x384xf32>
    tpu.vector_store %arg5[%c0_184, %c0_185, %c0_186], %136 {strides = array<i32>} : memref<2x8x384xf32, #tpu.memory_space<vmem>>, vector<1x8x384xf32>,
    %137 = vector.extract_strided_slice %132 {offsets = [0, 384], sizes = [8, 384], strides = [1, 1]} : vector<8x768xf32> to vector<8x384xf32>
    %c1_187 = arith.constant 1 : index
    %c0_188 = arith.constant 0 : index
    %c0_189 = arith.constant 0 : index
    %138 = vector.load %arg5[%c1_187, %c0_188, %c0_189] : memref<2x8x384xf32, #tpu.memory_space<vmem>>, vector<1x8x384xf32>
    %139 = vector.shape_cast %138 : vector<1x8x384xf32> to vector<8x384xf32>
    %140 = vector.shape_cast %137 : vector<8x384xf32> to vector<1x8x384xf32>
    tpu.vector_store %arg5[%c1_187, %c0_188, %c0_189], %140 {strides = array<i32>} : memref<2x8x384xf32, #tpu.memory_space<vmem>>, vector<1x8x384xf32>,
    return
  }
  func.func @transform_0(%arg0: i32) -> (i32, i32, i32) {
    %c0_i32 = arith.constant 0 : i32
    %c0_i32_0 = arith.constant 0 : i32
    %c0_i32_1 = arith.constant 0 : i32
    return %arg0, %c0_i32, %c0_i32_0 : i32, i32, i32
  }
  func.func @transform_1(%arg0: i32) -> (i32, i32) {
    %c0_i32 = arith.constant 0 : i32
    %c0_i32_0 = arith.constant 0 : i32
    %c0_i32_1 = arith.constant 0 : i32
    return %c0_i32, %c0_i32_0 : i32, i32
  }
  func.func @transform_2(%arg0: i32) -> (i32, i32) {
    %c0_i32 = arith.constant 0 : i32
    %c0_i32_0 = arith.constant 0 : i32
    %c0_i32_1 = arith.constant 0 : i32
    return %c0_i32, %c0_i32_0 : i32, i32
  }
  func.func @transform_3(%arg0: i32) -> (i32, i32) {
    %c0_i32 = arith.constant 0 : i32
    %c0_i32_0 = arith.constant 0 : i32
    %c0_i32_1 = arith.constant 0 : i32
    return %c0_i32, %c0_i32_0 : i32, i32
  }
  func.func @transform_4(%arg0: i32) -> (i32, i32, i32) {
    %c0_i32 = arith.constant 0 : i32
    %c0_i32_0 = arith.constant 0 : i32
    %c0_i32_1 = arith.constant 0 : i32
    return %arg0, %c0_i32, %c0_i32_0 : i32, i32, i32
  }
}

</mosaic_0001>

<llo_original>
// kernel: tpu_custom_call.1
$region0: #{tpu_custom_call.1}
  #allocation0 [shape = 'u32[]', space=smem, size = 0x4, offset = 0x4, fixed_abs, tag = 'smem constant byte address 0x4 - core index']
  #allocation1 [shape = 'u32[72,128]{1,0:T(1,128)}', space=vmem, size = 0x9000, scoped, tag = 'internal scratch']
  #allocation2 [shape = 'bf16[144,768]{1,0:T(8,128)(2,1)}', space=vmem, size = 0x36000, scoped, tag = 'scratch operand']
  #allocation3 [shape = 'bf16[2,16,512]{2,1,0:T(8,128)(2,1)}', space=vmem, size = 0x8000, scoped, tag = 'scratch operand']
  %s0 = inlined_call_operand.hbm [shape: bf16[4,16,512], index: 0, kind: input, shape index: {}]
  %s1 = inlined_call_operand.hbm [shape: f32[1,384], index: 1, kind: input, shape index: {}]
  %s2 = inlined_call_operand.hbm [shape: bf16[16,144], index: 2, kind: input, shape index: {}]
  %s3 = inlined_call_operand.hbm [shape: bf16[8,144], index: 3, kind: input, shape index: {}]
  %s4 = inlined_call_operand.hbm [shape: f32[4,8,384], index: 4, kind: output, shape index: {}]
  %s5 = sld [smem:[#allocation0]]
  $region65: #{tpu_custom_call.1} parent=0
    _
  %s7 = ssub.s32 1, %s5
  %s8 = scalar_select 0, %s7, %s5
  $region1: #{tpu_custom_call.1} parent=0
    #allocation4 [shape = 'u8[65536]{0}', space=vmem, size = 0x10000, scoped, tag = 'input window, operand 0']
    #allocation5 [shape = 's32[2]{0}', space=sflag, size = 0x8, scoped, tag = 'scoped memory for tpu_custom_call.1']
    #allocation6 [shape = 's32[2]{0}', space=sflag, size = 0x8, scoped, tag = 'scoped memory for tpu_custom_call.1']
    #allocation7 [shape = 'u8[1536]{0}', space=vmem, size = 0x800, scoped, tag = 'input window, operand 1, single buffered']
    #allocation8 [shape = 's32[1]{0}', space=sflag, size = 0x4, scoped, tag = 'scoped memory for tpu_custom_call.1']
    #allocation9 [shape = 'u8[8192]{0}', space=vmem, size = 0x2000, scoped, tag = 'input window, operand 2, single buffered']
    #allocation10 [shape = 'u8[4096]{0}', space=vmem, size = 0x1000, scoped, tag = 'input window, operand 3, single buffered']
    #allocation11 [shape = 's32[1]{0}', space=sflag, size = 0x4, scoped, tag = 'scoped memory for tpu_custom_call.1']
    #allocation12 [shape = 'u8[49152]{0}', space=vmem, size = 0xc000, scoped, tag = 'output window, operand 0']
    %9 = vsyncpa [#allocation5], 0
    %s10 = scalar_lea.sflag [#allocation5], 1
    %11 = vsyncpa %s10, 0
    %12 = vsyncpa [#allocation8], 0
    %13 = vsyncpa [#allocation11], 0
    %14 = vsyncpa [#allocation6], 0
    %s15 = scalar_lea.sflag [#allocation6], 1
    %16 = vsyncpa %s15, 0
    loop: start=0, step=1, limit=4
    $region2: #{tpu_custom_call.1} parent=1 // loop_pre_header
      _
    $region3: #{tpu_custom_call.1} parent=1 // loop_header
      %s18 = sphi 0, %s22
      %p19 = scmp.ge.s32.totalorder %s18, 4
      %s28 = sphi 0, %s30
      %s31 = sphi 0, %s28
      %s32 = sphi 0, %s31
      %s48 = sphi 0, %s32
      %s52 = sphi 0, %s52
      %s54 = sphi 0, %s52
      %s55 = sphi 0, %s54
      %s69 = sphi 0, %s55
      %s73 = sphi 0, %s73
      %s75 = sphi 0, %s73
      %s76 = sphi 0, %s75
      %s90 = sphi 0, %s76
      %s94 = sphi 0, %s94
      %s96 = sphi 0, %s94
      %s97 = sphi 0, %s96
      %s111 = sphi 0, %s97
      %s117 = sphi 0, %s119
      %s120 = sphi 0, %s117
      %s121 = sphi 0, %s120
      %s137 = sphi 0, %s121
    $region4: #{tpu_custom_call.1} parent=1 // loop_header_branch
      %21 = sbr.rel (%p19) target = $region8
    $region5: #{tpu_custom_call.1} parent=1 // loop_body
      %s23 = ssub.s32 %s18, 1
      %s24 = ssub.s32 %s18, 2
      %s25 = sadd.s32 %s18, 1
      %s26 = ssub.s32 %s18, %s25
      %p27 = scmp.eq.s32.totalorder %s26, 0
      %s29 = sadd.s32 %s28, 1
      %s30 = scalar_select %p27, %s28, %s29
      %p33 = pneg %p27
      %p34 = scmp.eq.s32.totalorder %s18, 1
      %p35 = por %p33, %p34
      %p36 = scmp.ne.s32.totalorder %s28, %s31
      %p37 = scmp.eq.s32.totalorder %s18, 0
      %p38 = por %p36, %p37
      %p39 = scmp.ne.s32.totalorder %s28, %s31
      %p40 = scmp.eq.s32.totalorder %s23, 1
      %p41 = por %p39, %p40
      %p42 = scmp.ne.s32.totalorder %s31, %s32
      %p43 = scmp.eq.s32.totalorder %s23, 0
      %p44 = por %p42, %p43
      %p45 = scmp.ne.s32.totalorder %s31, %s32
      %p46 = scmp.eq.s32.totalorder %s24, 1
      %p47 = por %p45, %p46
      %p49 = scmp.ne.s32.totalorder %s32, %s48
      %p50 = scmp.eq.s32.totalorder %s24, 0
      %p51 = por %p49, %p50
      %s53 = sadd.s32 %s52, 1
      %p56 = scmp.eq.s32.totalorder %s18, 1
      %p57 = scmp.ne.s32.totalorder %s52, %s54
      %p58 = scmp.eq.s32.totalorder %s18, 0
      %p59 = por %p57, %p58
      %p60 = scmp.ne.s32.totalorder %s52, %s54
      %p61 = scmp.eq.s32.totalorder %s23, 1
      %p62 = por %p60, %p61
      %p63 = scmp.ne.s32.totalorder %s54, %s55
      %p64 = scmp.eq.s32.totalorder %s23, 0
      %p65 = por %p63, %p64
      %p66 = scmp.ne.s32.totalorder %s54, %s55
      %p67 = scmp.eq.s32.totalorder %s24, 1
      %p68 = por %p66, %p67
      %p70 = scmp.ne.s32.totalorder %s55, %s69
      %p71 = scmp.eq.s32.totalorder %s24, 0
      %p72 = por %p70, %p71
      %s74 = sadd.s32 %s73, 1
      %p77 = scmp.eq.s32.totalorder %s18, 1
      %p78 = scmp.ne.s32.totalorder %s73, %s75
      %p79 = scmp.eq.s32.totalorder %s18, 0
      %p80 = por %p78, %p79
      %p81 = scmp.ne.s32.totalorder %s73, %s75
      %p82 = scmp.eq.s32.totalorder %s23, 1
      %p83 = por %p81, %p82
      %p84 = scmp.ne.s32.totalorder %s75, %s76
      %p85 = scmp.eq.s32.totalorder %s23, 0
      %p86 = por %p84, %p85
      %p87 = scmp.ne.s32.totalorder %s75, %s76
      %p88 = scmp.eq.s32.totalorder %s24, 1
      %p89 = por %p87, %p88
      %p91 = scmp.ne.s32.totalorder %s76, %s90
      %p92 = scmp.eq.s32.totalorder %s24, 0
      %p93 = por %p91, %p92
      %s95 = sadd.s32 %s94, 1
      %p98 = scmp.eq.s32.totalorder %s18, 1
      %p99 = scmp.ne.s32.totalorder %s94, %s96
      %p100 = scmp.eq.s32.totalorder %s18, 0
      %p101 = por %p99, %p100
      %p102 = scmp.ne.s32.totalorder %s94, %s96
      %p103 = scmp.eq.s32.totalorder %s23, 1
      %p104 = por %p102, %p103
      %p105 = scmp.ne.s32.totalorder %s96, %s97
      %p106 = scmp.eq.s32.totalorder %s23, 0
      %p107 = por %p105, %p106
      %p108 = scmp.ne.s32.totalorder %s96, %s97
      %p109 = scmp.eq.s32.totalorder %s24, 1
      %p110 = por %p108, %p109
      %p112 = scmp.ne.s32.totalorder %s97, %s111
      %p113 = scmp.eq.s32.totalorder %s24, 0
      %p114 = por %p112, %p113
      %s115 = ssub.s32 %s18, %s25
      %p116 = scmp.eq.s32.totalorder %s115, 0
      %s118 = sadd.s32 %s117, 1
      %s119 = scalar_select %p116, %s117, %s118
      %p122 = pneg %p116
      %p123 = scmp.eq.s32.totalorder %s18, 1
      %p124 = por %p122, %p123
      %p125 = scmp.ne.s32.totalorder %s117, %s120
      %p126 = scmp.eq.s32.totalorder %s18, 0
      %p127 = por %p125, %p126
      %p128 = scmp.ne.s32.totalorder %s117, %s120
      %p129 = scmp.eq.s32.totalorder %s23, 1
      %p130 = por %p128, %p129
      %p131 = scmp.ne.s32.totalorder %s120, %s121
      %p132 = scmp.eq.s32.totalorder %s23, 0
      %p133 = por %p131, %p132
      %p134 = scmp.ne.s32.totalorder %s120, %s121
      %p135 = scmp.eq.s32.totalorder %s24, 1
      %p136 = por %p134, %p135
      %p138 = scmp.ne.s32.totalorder %s121, %s137
      %p139 = scmp.eq.s32.totalorder %s24, 0
      %p140 = por %p138, %p139
      %p141 = scmp.le.s32.totalorder 1, %s18
      %p142 = scmp.lt.s32.totalorder %s18, 3
      %p143 = pnand %p141, %p142
      %p144 = pneg %p143
      // Predicated region
      $region9: #{tpu_custom_call.1} parent=5 // pred_check
        _
      $region10: #{tpu_custom_call.1} parent=5 // pred_check_branch
        %146 = sbr.rel (%p143) target = $region12
      $region11: #{tpu_custom_call.1} parent=5 // pred_region
        %s147 = ssub.s32 %s18, 1
        // Predicated region
        $region13: #{tpu_custom_call.1} parent=11 // pred_check
          %p148 = pneg %p65
        $region14: #{tpu_custom_call.1} parent=11 // pred_check_branch
          %150 = sbr.rel (%p148) target = $region16
        $region15: #{tpu_custom_call.1} parent=11 // pred_region
          %152 = vsyncadd [#allocation8], 0
          %s154 = sshll.u32 %s1, 4
          %s155 = int_to_ptr.hbm [resolvable:$true] %s154
          %s156 = sshll.u32 [#allocation7], 4
          %s157 = int_to_ptr.vmem [resolvable:$true] %s156
          %159 = dma.hbm_to_vmem [thread:$0]  %s155, 48, %s157, [#allocation8]
        $region16: #{tpu_custom_call.1} parent=11 // pred_fallthru
          _
        // Predicated region
        $region17: #{tpu_custom_call.1} parent=11 // pred_check
          %p160 = pneg %p86
        $region18: #{tpu_custom_call.1} parent=11 // pred_check_branch
          %162 = sbr.rel (%p160) target = $region20
        $region19: #{tpu_custom_call.1} parent=11 // pred_region
          %164 = vsyncadd [#allocation8], 0
          %s165 = sshll.u32 %s2, 4
          %s166 = int_to_ptr.hbm [resolvable:$true] %s165
          %s167 = sshll.u32 [#allocation9], 4
          %s168 = int_to_ptr.vmem [resolvable:$true] %s167
          %173 = dma.hbm_to_vmem [thread:$0]  %s166, 256, %s168, [#allocation8], 128, 128, 8
        $region20: #{tpu_custom_call.1} parent=11 // pred_fallthru
          _
        // Predicated region
        $region21: #{tpu_custom_call.1} parent=11 // pred_check
          %p174 = pneg %p107
        $region22: #{tpu_custom_call.1} parent=11 // pred_check_branch
          %176 = sbr.rel (%p174) target = $region24
        $region23: #{tpu_custom_call.1} parent=11 // pred_region
          %178 = vsyncadd [#allocation11], 0
          %s180 = sshll.u32 %s3, 4
          %s181 = int_to_ptr.hbm [resolvable:$true] %s180
          %s182 = sshll.u32 [#allocation10], 4
          %s183 = int_to_ptr.vmem [resolvable:$true] %s182
          %185 = dma.hbm_to_vmem [thread:$0]  %s181, 128, %s183, [#allocation11]
        $region24: #{tpu_custom_call.1} parent=11 // pred_fallthru
          _
      $region12: #{tpu_custom_call.1} parent=5 // pred_fallthru
        _
      %p186 = scmp.lt.s32.totalorder %s18, 2
      // Predicated region
      $region25: #{tpu_custom_call.1} parent=5 // pred_check
        %p187 = pneg %p186
      $region26: #{tpu_custom_call.1} parent=5 // pred_check_branch
        %189 = sbr.rel (%p187) target = $region28
      $region27: #{tpu_custom_call.1} parent=5 // pred_region
        // Predicated region
        $region29: #{tpu_custom_call.1} parent=27 // pred_check
          %p190 = pneg %p38
        $region30: #{tpu_custom_call.1} parent=27 // pred_check_branch
          %192 = sbr.rel (%p190) target = $region32
        $region31: #{tpu_custom_call.1} parent=27 // pred_region
          %s193 = sand.u32 %s28, 1
          %s194 = scalar_lea.sflag [#allocation5], %s193
          %s195 = sand.u32 %s28, 1
          %s196 = smul.addr %s195, 64
          %s197 = scalar_lea.vmem [#allocation4], %s196
          %s198 = smul.u32 2, %s18
          %200 = vsyncadd %s194, 0
          %s201 = smul.addr %s198, 8
          %s202 = smul.addr %s201, 4
          %s203 = scalar_lea.hbm %s0, %s202
          %s204 = sshll.u32 %s203, 4
          %s205 = int_to_ptr.hbm [resolvable:$true] %s204
          %s206 = sshll.u32 %s197, 4
          %s207 = int_to_ptr.vmem [resolvable:$true] %s206
          %212 = dma.hbm_to_vmem [thread:$0]  %s205, 1024, %s207, %s194, 256, 256, 16
        $region32: #{tpu_custom_call.1} parent=27 // pred_fallthru
          _
      $region28: #{tpu_custom_call.1} parent=5 // pred_fallthru
        _
      %p213 = scmp.le.s32.totalorder 1, %s18
      %p214 = scmp.lt.s32.totalorder %s18, 3
      %p215 = pnand %p213, %p214
      %p216 = pneg %p215
      // Predicated region
      $region33: #{tpu_custom_call.1} parent=5 // pred_check
        _
      $region34: #{tpu_custom_call.1} parent=5 // pred_check_branch
        %218 = sbr.rel (%p215) target = $region36
      $region35: #{tpu_custom_call.1} parent=5 // pred_region
        %s219 = ssub.s32 %s18, 1
        %s220 = sand.u32 %s31, 1
        %s221 = scalar_lea.sflag [#allocation5], %s220
        %s222 = sand.u32 %s31, 1
        %s223 = smul.addr %s222, 64
        %s224 = scalar_lea.vmem [#allocation4], %s223
        // Predicated region
        $region37: #{tpu_custom_call.1} parent=35 // pred_check
          %p225 = pneg %p44
        $region38: #{tpu_custom_call.1} parent=35 // pred_check_branch
          %227 = sbr.rel (%p225) target = $region40
        $region39: #{tpu_custom_call.1} parent=35 // pred_region
          %229 = dma.done %s221, 1024
        $region40: #{tpu_custom_call.1} parent=35 // pred_fallthru
          _
        // Predicated region
        $region41: #{tpu_custom_call.1} parent=35 // pred_check
          %p230 = pneg %p65
        $region42: #{tpu_custom_call.1} parent=35 // pred_check_branch
          %232 = sbr.rel (%p230) target = $region44
        $region43: #{tpu_custom_call.1} parent=35 // pred_region
          %234 = dma.done [#allocation8], 48
        $region44: #{tpu_custom_call.1} parent=35 // pred_fallthru
          _
        // Predicated region
        $region45: #{tpu_custom_call.1} parent=35 // pred_check
          %p235 = pneg %p86
        $region46: #{tpu_custom_call.1} parent=35 // pred_check_branch
          %237 = sbr.rel (%p235) target = $region48
        $region47: #{tpu_custom_call.1} parent=35 // pred_region
          %239 = dma.done [#allocation8], 256
        $region48: #{tpu_custom_call.1} parent=35 // pred_fallthru
          _
        // Predicated region
        $region49: #{tpu_custom_call.1} parent=35 // pred_check
          %p240 = pneg %p107
        $region50: #{tpu_custom_call.1} parent=35 // pred_check_branch
          %242 = sbr.rel (%p240) target = $region52
        $region51: #{tpu_custom_call.1} parent=35 // pred_region
          %244 = dma.done [#allocation11], 128
        $region52: #{tpu_custom_call.1} parent=35 // pred_fallthru
          _
        %s245 = sand.u32 %s31, 1
        %s246 = scalar_lea.sflag [#allocation5], %s245
        %s247 = sand.u32 %s31, 1
        %s248 = smul.addr %s247, 64
        %s249 = scalar_lea.vmem [#allocation4], %s248
        %p250 = pneg %p44
        %p251 = pneg %p41
        %p252 = pneg %p65
        %p253 = pneg %p62
        %p254 = pneg %p86
        %p255 = pneg %p83
        %p256 = pneg %p107
        %p257 = pneg %p104
        %p258 = pneg %p133
        %p259 = pneg %p130
        %s260 = sand.u32 %s120, 1
        %s261 = scalar_lea.sflag [#allocation6], %s260
        %s262 = sand.u32 %s120, 1
        %s263 = smul.addr %s262, 48
        %s264 = scalar_lea.vmem [#allocation12], %s263
        %s265 = smul.u32 2, %s23
        %s266 = smul.u32 2, %s23
        %268 = vst [vmem:[#allocation3] sm:$0xff] 0
        %269 = vst [vmem:[#allocation3 + $0x8] sm:$0xff] 0
        %270 = vst [vmem:[#allocation3 + $0x10] sm:$0xff] 0
        %271 = vst [vmem:[#allocation3 + $0x18] sm:$0xff] 0
        %272 = vst [vmem:[#allocation3 + $0x20] sm:$0xff] 0
        %273 = vst [vmem:[#allocation3 + $0x28] sm:$0xff] 0
        %274 = vst [vmem:[#allocation3 + $0x30] sm:$0xff] 0
        %275 = vst [vmem:[#allocation3 + $0x38] sm:$0xff] 0
        %v276 = vld [vmem:[#allocation7] sm:$0x7]
        %v277 = vld [vmem:[%s224] sm:$0xff]
        %v278 = vld [vmem:[%s224 + $0x8] sm:$0xf]
        %v279 = vld [vmem:[%s224 + $0x10] sm:$0xff]
        %v280 = vld [vmem:[%s224 + $0x18] sm:$0xf]
        %281 = vst [vmem:[#allocation2] sm:$0xff] %v277
        %282 = vst [vmem:[#allocation2 + $0x8] sm:$0xf] %v278
        %283 = vst [vmem:[#allocation2 + $0x18] sm:$0xff] %v279
        %284 = vst [vmem:[#allocation2 + $0x20] sm:$0xf] %v280
        %v285 = vld [vmem:[%s224] sm:$0xff]
        %v286 = vld [vmem:[%s224 + $0x8] sm:$0xff]
        %v287 = vld [vmem:[%s224 + $0x10] sm:$0xff]
        %v288 = vld [vmem:[%s224 + $0x18] sm:$0xff]
        %293 = vrot.lane.b32.xlu0 %v285, 127
        %v294 = vpop.permute.xlu0 %293
        %295 = vrot.lane.b32.xlu0 %v286, 127
        %v296 = vpop.permute.xlu0 %295
        %297 = vrot.lane.b32.xlu0 %v287, 127
        %v298 = vpop.permute.xlu0 %297
        %299 = vrot.lane.b32.xlu0 %v288, 127
        %v300 = vpop.permute.xlu0 %299
        %v301 = vrot.slane %v294, 4
        %v302 = vrot.slane %v296, 4
        %v303 = vrot.slane %v298, 4
        %v304 = vrot.slane %v300, 4
        %vm305 = vcmask 1043456
        %v306 = vsel %vm305, %v301, %v302
        %vm307 = vcmask 1039360
        %v308 = vsel %vm307, %v294, %v306
        %v309 = vsel %vm307, %v296, %v302
        %v310 = vsel %vm305, %v303, %v304
        %v311 = vsel %vm307, %v298, %v310
        %v312 = vsel %vm307, %v300, %v304
        %317 = vst [vmem:[#allocation2 + $0x30] sm:$0xff] %v308
        %318 = vst [vmem:[#allocation2 + $0x38] sm:$0xf] %v309
        %319 = vst [vmem:[#allocation2 + $0x48] sm:$0xff] %v311
        %320 = vst [vmem:[#allocation2 + $0x50] sm:$0xf] %v312
        %v321 = vld [vmem:[%s224] sm:$0xff]
        %v322 = vld [vmem:[%s224 + $0x8] sm:$0xff]
        %v323 = vld [vmem:[%s224 + $0x10] sm:$0xff]
        %v324 = vld [vmem:[%s224 + $0x18] sm:$0xff]
        %329 = vrot.lane.b32.xlu0 %v321, 126
        %v330 = vpop.permute.xlu0 %329
        %331 = vrot.lane.b32.xlu0 %v322, 126
        %v332 = vpop.permute.xlu0 %331
        %333 = vrot.lane.b32.xlu0 %v323, 126
        %v334 = vpop.permute.xlu0 %333
        %335 = vrot.lane.b32.xlu0 %v324, 126
        %v336 = vpop.permute.xlu0 %335
        %v337 = vrot.slane %v330, 4
        %v338 = vrot.slane %v332, 4
        %v339 = vrot.slane %v334, 4
        %v340 = vrot.slane %v336, 4
        %v341 = vsel %vm305, %v337, %v338
        %vm342 = vcmask 1031168
        %v343 = vsel %vm342, %v330, %v341
        %v344 = vsel %vm342, %v332, %v338
        %v345 = vsel %vm305, %v339, %v340
        %v346 = vsel %vm342, %v334, %v345
        %v347 = vsel %vm342, %v336, %v340
        %352 = vst [vmem:[#allocation2 + $0x60] sm:$0xff] %v343
        %353 = vst [vmem:[#allocation2 + $0x68] sm:$0xf] %v344
        %354 = vst [vmem:[#allocation2 + $0x78] sm:$0xff] %v346
        %355 = vst [vmem:[#allocation2 + $0x80] sm:$0xf] %v347
        %v356 = vld [vmem:[%s224] sm:$0xff]
        %v357 = vld [vmem:[%s224 + $0x8] sm:$0xff]
        %v358 = vld [vmem:[%s224 + $0x10] sm:$0xff]
        %v359 = vld [vmem:[%s224 + $0x18] sm:$0xff]
        %364 = vrot.lane.b32.xlu0 %v356, 111
        %v365 = vpop.permute.xlu0 %364
        %366 = vrot.lane.b32.xlu0 %v357, 111
        %v367 = vpop.permute.xlu0 %366
        %368 = vrot.lane.b32.xlu0 %v358, 111
        %v369 = vpop.permute.xlu0 %368
        %370 = vrot.lane.b32.xlu0 %v359, 111
        %v371 = vpop.permute.xlu0 %370
        %v372 = vrot.slane %v365, 4
        %v373 = vrot.slane %v367, 4
        %v374 = vrot.slane %v369, 4
        %v375 = vrot.slane %v371, 4
        %v376 = vsel %vm305, %v372, %v373
        %vm377 = vcmask 908288
        %v378 = vsel %vm377, %v365, %v376
        %v379 = vsel %vm377, %v367, %v373
        %v380 = vsel %vm305, %v374, %v375
        %v381 = vsel %vm377, %v369, %v380
        %v382 = vsel %vm377, %v371, %v375
        %387 = vst [vmem:[#allocation2 + $0x90] sm:$0xff] %v378
        %388 = vst [vmem:[#allocation2 + $0x98] sm:$0xf] %v379
        %389 = vst [vmem:[#allocation2 + $0xa8] sm:$0xff] %v381
        %390 = vst [vmem:[#allocation2 + $0xb0] sm:$0xf] %v382
        %v391 = vld [vmem:[%s224] sm:$0xff]
        %v392 = vld [vmem:[%s224 + $0x8] sm:$0xff]
        %v393 = vld [vmem:[%s224 + $0x10] sm:$0xff]
        %v394 = vld [vmem:[%s224 + $0x18] sm:$0xff]
        %399 = vrot.lane.b32.xlu0 %v391, 110
        %v400 = vpop.permute.xlu0 %399
        %401 = vrot.lane.b32.xlu0 %v392, 110
        %v402 = vpop.permute.xlu0 %401
        %403 = vrot.lane.b32.xlu0 %v393, 110
        %v404 = vpop.permute.xlu0 %403
        %405 = vrot.lane.b32.xlu0 %v394, 110
        %v406 = vpop.permute.xlu0 %405
        %v407 = vrot.slane %v400, 4
        %v408 = vrot.slane %v402, 4
        %v409 = vrot.slane %v404, 4
        %v410 = vrot.slane %v406, 4
        %v411 = vsel %vm305, %v407, %v408
        %vm412 = vcmask 900096
        %v413 = vsel %vm412, %v400, %v411
        %v414 = vsel %vm412, %v402, %v408
        %v415 = vsel %vm305, %v409, %v410
        %v416 = vsel %vm412, %v404, %v415
        %v417 = vsel %vm412, %v406, %v410
        %422 = vst [vmem:[#allocation2 + $0xc0] sm:$0xff] %v413
        %423 = vst [vmem:[#allocation2 + $0xc8] sm:$0xf] %v414
        %424 = vst [vmem:[#allocation2 + $0xd8] sm:$0xff] %v416
        %425 = vst [vmem:[#allocation2 + $0xe0] sm:$0xf] %v417
        %v426 = vld [vmem:[%s224] sm:$0xff]
        %v427 = vld [vmem:[%s224 + $0x8] sm:$0xff]
        %v428 = vld [vmem:[%s224 + $0x10] sm:$0xff]
        %v429 = vld [vmem:[%s224 + $0x18] sm:$0xff]
        %434 = vrot.lane.b32.xlu0 %v426, 109
        %v435 = vpop.permute.xlu0 %434
        %436 = vrot.lane.b32.xlu0 %v427, 109
        %v437 = vpop.permute.xlu0 %436
        %438 = vrot.lane.b32.xlu0 %v428, 109
        %v439 = vpop.permute.xlu0 %438
        %440 = vrot.lane.b32.xlu0 %v429, 109
        %v441 = vpop.permute.xlu0 %440
        %v442 = vrot.slane %v435, 4
        %v443 = vrot.slane %v437, 4
        %v444 = vrot.slane %v439, 4
        %v445 = vrot.slane %v441, 4
        %v446 = vsel %vm305, %v442, %v443
        %vm447 = vcmask 891904
        %v448 = vsel %vm447, %v435, %v446
        %v449 = vsel %vm447, %v437, %v443
        %v450 = vsel %vm305, %v444, %v445
        %v451 = vsel %vm447, %v439, %v450
        %v452 = vsel %vm447, %v441, %v445
        %457 = vst [vmem:[#allocation2 + $0xf0] sm:$0xff] %v448
        %458 = vst [vmem:[#allocation2 + $0xf8] sm:$0xf] %v449
        %459 = vst [vmem:[#allocation2 + $0x108] sm:$0xff] %v451
        %460 = vst [vmem:[#allocation2 + $0x110] sm:$0xf] %v452
        %v461 = vld [vmem:[%s224] sm:$0xff]
        %v462 = vld [vmem:[%s224 + $0x8] sm:$0xff]
        %v463 = vld [vmem:[%s224 + $0x10] sm:$0xff]
        %v464 = vld [vmem:[%s224 + $0x18] sm:$0xff]
        %469 = vrot.lane.b32.xlu0 %v461, 94
        %v470 = vpop.permute.xlu0 %469
        %471 = vrot.lane.b32.xlu0 %v462, 94
        %v472 = vpop.permute.xlu0 %471
        %473 = vrot.lane.b32.xlu0 %v463, 94
        %v474 = vpop.permute.xlu0 %473
        %475 = vrot.lane.b32.xlu0 %v464, 94
        %v476 = vpop.permute.xlu0 %475
        %v477 = vrot.slane %v470, 4
        %v478 = vrot.slane %v472, 4
        %v479 = vrot.slane %v474, 4
        %v480 = vrot.slane %v476, 4
        %v481 = vsel %vm305, %v477, %v478
        %vm482 = vcmask 769024
        %v483 = vsel %vm482, %v470, %v481
        %v484 = vsel %vm482, %v472, %v478
        %v485 = vsel %vm305, %v479, %v480
        %v486 = vsel %vm482, %v474, %v485
        %v487 = vsel %vm482, %v476, %v480
        %492 = vst [vmem:[#allocation2 + $0x120] sm:$0xff] %v483
        %493 = vst [vmem:[#allocation2 + $0x128] sm:$0xf] %v484
        %494 = vst [vmem:[#allocation2 + $0x138] sm:$0xff] %v486
        %495 = vst [vmem:[#allocation2 + $0x140] sm:$0xf] %v487
        %v496 = vld [vmem:[%s224] sm:$0xff]
        %v497 = vld [vmem:[%s224 + $0x8] sm:$0xff]
        %v498 = vld [vmem:[%s224 + $0x10] sm:$0xff]
        %v499 = vld [vmem:[%s224 + $0x18] sm:$0xff]
        %504 = vrot.lane.b32.xlu0 %v496, 93
        %v505 = vpop.permute.xlu0 %504
        %506 = vrot.lane.b32.xlu0 %v497, 93
        %v507 = vpop.permute.xlu0 %506
        %508 = vrot.lane.b32.xlu0 %v498, 93
        %v509 = vpop.permute.xlu0 %508
        %510 = vrot.lane.b32.xlu0 %v499, 93
        %v511 = vpop.permute.xlu0 %510
        %v512 = vrot.slane %v505, 4
        %v513 = vrot.slane %v507, 4
        %v514 = vrot.slane %v509, 4
        %v515 = vrot.slane %v511, 4
        %v516 = vsel %vm305, %v512, %v513
        %vm517 = vcmask 760832
        %v518 = vsel %vm517, %v505, %v516
        %v519 = vsel %vm517, %v507, %v513
        %v520 = vsel %vm305, %v514, %v515
        %v521 = vsel %vm517, %v509, %v520
        %v522 = vsel %vm517, %v511, %v515
        %527 = vst [vmem:[#allocation2 + $0x150] sm:$0xff] %v518
        %528 = vst [vmem:[#allocation2 + $0x158] sm:$0xf] %v519
        %529 = vst [vmem:[#allocation2 + $0x168] sm:$0xff] %v521
        %530 = vst [vmem:[#allocation2 + $0x170] sm:$0xf] %v522
        %v531 = vld [vmem:[%s224] sm:$0xff]
        %v532 = vld [vmem:[%s224 + $0x8] sm:$0xff]
        %v533 = vld [vmem:[%s224 + $0x10] sm:$0xff]
        %v534 = vld [vmem:[%s224 + $0x18] sm:$0xff]
        %539 = vrot.lane.b32.xlu0 %v531, 92
        %v540 = vpop.permute.xlu0 %539
        %541 = vrot.lane.b32.xlu0 %v532, 92
        %v542 = vpop.permute.xlu0 %541
        %543 = vrot.lane.b32.xlu0 %v533, 92
        %v544 = vpop.permute.xlu0 %543
        %545 = vrot.lane.b32.xlu0 %v534, 92
        %v546 = vpop.permute.xlu0 %545
        %v547 = vrot.slane %v540, 4
        %v548 = vrot.slane %v542, 4
        %v549 = vrot.slane %v544, 4
        %v550 = vrot.slane %v546, 4
        %v551 = vsel %vm305, %v547, %v548
        %vm552 = vcmask 752640
        %v553 = vsel %vm552, %v540, %v551
        %v554 = vsel %vm552, %v542, %v548
        %v555 = vsel %vm305, %v549, %v550
        %v556 = vsel %vm552, %v544, %v555
        %v557 = vsel %vm552, %v546, %v550
        %562 = vst [vmem:[#allocation2 + $0x180] sm:$0xff] %v553
        %563 = vst [vmem:[#allocation2 + $0x188] sm:$0xf] %v554
        %564 = vst [vmem:[#allocation2 + $0x198] sm:$0xff] %v556
        %565 = vst [vmem:[#allocation2 + $0x1a0] sm:$0xf] %v557
        %s566 = scalar_lea.vmem %s224, 32 [#allocation4]
        %v567 = vld [vmem:[%s566] sm:$0xff]
        %v568 = vld [vmem:[%s566 + $0x8] sm:$0xf]
        %v569 = vld [vmem:[%s566 + $0x10] sm:$0xff]
        %v570 = vld [vmem:[%s566 + $0x18] sm:$0xf]
        %571 = vst [vmem:[#allocation2 + $0xc] sm:$0xff] %v567
        %572 = vst [vmem:[#allocation2 + $0x14] sm:$0xf] %v568
        %573 = vst [vmem:[#allocation2 + $0x24] sm:$0xff] %v569
        %574 = vst [vmem:[#allocation2 + $0x2c] sm:$0xf] %v570
        %v575 = vld [vmem:[%s566] sm:$0xff]
        %v576 = vld [vmem:[%s566 + $0x8] sm:$0xff]
        %v577 = vld [vmem:[%s566 + $0x10] sm:$0xff]
        %v578 = vld [vmem:[%s566 + $0x18] sm:$0xff]
        %583 = vrot.lane.b32.xlu0 %v575, 127
        %v584 = vpop.permute.xlu0 %583
        %585 = vrot.lane.b32.xlu0 %v576, 127
        %v586 = vpop.permute.xlu0 %585
        %587 = vrot.lane.b32.xlu0 %v577, 127
        %v588 = vpop.permute.xlu0 %587
        %589 = vrot.lane.b32.xlu0 %v578, 127
        %v590 = vpop.permute.xlu0 %589
        %v591 = vrot.slane %v584, 4
        %v592 = vrot.slane %v586, 4
        %v593 = vrot.slane %v588, 4
        %v594 = vrot.slane %v590, 4
        %v595 = vsel %vm305, %v591, %v592
        %v596 = vsel %vm307, %v584, %v595
        %v597 = vsel %vm307, %v586, %v592
        %v598 = vsel %vm305, %v593, %v594
        %v599 = vsel %vm307, %v588, %v598
        %v600 = vsel %vm307, %v590, %v594
        %605 = vst [vmem:[#allocation2 + $0x3c] sm:$0xff] %v596
        %606 = vst [vmem:[#allocation2 + $0x44] sm:$0xf] %v597
        %607 = vst [vmem:[#allocation2 + $0x54] sm:$0xff] %v599
        %608 = vst [vmem:[#allocation2 + $0x5c] sm:$0xf] %v600
        %v609 = vld [vmem:[%s566] sm:$0xff]
        %v610 = vld [vmem:[%s566 + $0x8] sm:$0xff]
        %v611 = vld [vmem:[%s566 + $0x10] sm:$0xff]
        %v612 = vld [vmem:[%s566 + $0x18] sm:$0xff]
        %617 = vrot.lane.b32.xlu0 %v609, 126
        %v618 = vpop.permute.xlu0 %617
        %619 = vrot.lane.b32.xlu0 %v610, 126
        %v620 = vpop.permute.xlu0 %619
        %621 = vrot.lane.b32.xlu0 %v611, 126
        %v622 = vpop.permute.xlu0 %621
        %623 = vrot.lane.b32.xlu0 %v612, 126
        %v624 = vpop.permute.xlu0 %623
        %v625 = vrot.slane %v618, 4
        %v626 = vrot.slane %v620, 4
        %v627 = vrot.slane %v622, 4
        %v628 = vrot.slane %v624, 4
        %v629 = vsel %vm305, %v625, %v626
        %v630 = vsel %vm342, %v618, %v629
        %v631 = vsel %vm342, %v620, %v626
        %v632 = vsel %vm305, %v627, %v628
        %v633 = vsel %vm342, %v622, %v632
        %v634 = vsel %vm342, %v624, %v628
        %639 = vst [vmem:[#allocation2 + $0x6c] sm:$0xff] %v630
        %640 = vst [vmem:[#allocation2 + $0x74] sm:$0xf] %v631
        %641 = vst [vmem:[#allocation2 + $0x84] sm:$0xff] %v633
        %642 = vst [vmem:[#allocation2 + $0x8c] sm:$0xf] %v634
        %v643 = vld [vmem:[%s566] sm:$0xff]
        %v644 = vld [vmem:[%s566 + $0x8] sm:$0xff]
        %v645 = vld [vmem:[%s566 + $0x10] sm:$0xff]
        %v646 = vld [vmem:[%s566 + $0x18] sm:$0xff]
        %651 = vrot.lane.b32.xlu0 %v643, 111
        %v652 = vpop.permute.xlu0 %651
        %653 = vrot.lane.b32.xlu0 %v644, 111
        %v654 = vpop.permute.xlu0 %653
        %655 = vrot.lane.b32.xlu0 %v645, 111
        %v656 = vpop.permute.xlu0 %655
        %657 = vrot.lane.b32.xlu0 %v646, 111
        %v658 = vpop.permute.xlu0 %657
        %v659 = vrot.slane %v652, 4
        %v660 = vrot.slane %v654, 4
        %v661 = vrot.slane %v656, 4
        %v662 = vrot.slane %v658, 4
        %v663 = vsel %vm305, %v659, %v660
        %v664 = vsel %vm377, %v652, %v663
        %v665 = vsel %vm377, %v654, %v660
        %v666 = vsel %vm305, %v661, %v662
        %v667 = vsel %vm377, %v656, %v666
        %v668 = vsel %vm377, %v658, %v662
        %673 = vst [vmem:[#allocation2 + $0x9c] sm:$0xff] %v664
        %674 = vst [vmem:[#allocation2 + $0xa4] sm:$0xf] %v665
        %675 = vst [vmem:[#allocation2 + $0xb4] sm:$0xff] %v667
        %676 = vst [vmem:[#allocation2 + $0xbc] sm:$0xf] %v668
        %v677 = vld [vmem:[%s566] sm:$0xff]
        %v678 = vld [vmem:[%s566 + $0x8] sm:$0xff]
        %v679 = vld [vmem:[%s566 + $0x10] sm:$0xff]
        %v680 = vld [vmem:[%s566 + $0x18] sm:$0xff]
        %685 = vrot.lane.b32.xlu0 %v677, 110
        %v686 = vpop.permute.xlu0 %685
        %687 = vrot.lane.b32.xlu0 %v678, 110
        %v688 = vpop.permute.xlu0 %687
        %689 = vrot.lane.b32.xlu0 %v679, 110
        %v690 = vpop.permute.xlu0 %689
        %691 = vrot.lane.b32.xlu0 %v680, 110
        %v692 = vpop.permute.xlu0 %691
        %v693 = vrot.slane %v686, 4
        %v694 = vrot.slane %v688, 4
        %v695 = vrot.slane %v690, 4
        %v696 = vrot.slane %v692, 4
        %v697 = vsel %vm305, %v693, %v694
        %v698 = vsel %vm412, %v686, %v697
        %v699 = vsel %vm412, %v688, %v694
        %v700 = vsel %vm305, %v695, %v696
        %v701 = vsel %vm412, %v690, %v700
        %v702 = vsel %vm412, %v692, %v696
        %707 = vst [vmem:[#allocation2 + $0xcc] sm:$0xff] %v698
        %708 = vst [vmem:[#allocation2 + $0xd4] sm:$0xf] %v699
        %709 = vst [vmem:[#allocation2 + $0xe4] sm:$0xff] %v701
        %710 = vst [vmem:[#allocation2 + $0xec] sm:$0xf] %v702
        %v711 = vld [vmem:[%s566] sm:$0xff]
        %v712 = vld [vmem:[%s566 + $0x8] sm:$0xff]
        %v713 = vld [vmem:[%s566 + $0x10] sm:$0xff]
        %v714 = vld [vmem:[%s566 + $0x18] sm:$0xff]
        %719 = vrot.lane.b32.xlu0 %v711, 109
        %v720 = vpop.permute.xlu0 %719
        %721 = vrot.lane.b32.xlu0 %v712, 109
        %v722 = vpop.permute.xlu0 %721
        %723 = vrot.lane.b32.xlu0 %v713, 109
        %v724 = vpop.permute.xlu0 %723
        %725 = vrot.lane.b32.xlu0 %v714, 109
        %v726 = vpop.permute.xlu0 %725
        %v727 = vrot.slane %v720, 4
        %v728 = vrot.slane %v722, 4
        %v729 = vrot.slane %v724, 4
        %v730 = vrot.slane %v726, 4
        %v731 = vsel %vm305, %v727, %v728
        %v732 = vsel %vm447, %v720, %v731
        %v733 = vsel %vm447, %v722, %v728
        %v734 = vsel %vm305, %v729, %v730
        %v735 = vsel %vm447, %v724, %v734
        %v736 = vsel %vm447, %v726, %v730
        %741 = vst [vmem:[#allocation2 + $0xfc] sm:$0xff] %v732
        %742 = vst [vmem:[#allocation2 + $0x104] sm:$0xf] %v733
        %743 = vst [vmem:[#allocation2 + $0x114] sm:$0xff] %v735
        %744 = vst [vmem:[#allocation2 + $0x11c] sm:$0xf] %v736
        %v745 = vld [vmem:[%s566] sm:$0xff]
        %v746 = vld [vmem:[%s566 + $0x8] sm:$0xff]
        %v747 = vld [vmem:[%s566 + $0x10] sm:$0xff]
        %v748 = vld [vmem:[%s566 + $0x18] sm:$0xff]
        %753 = vrot.lane.b32.xlu0 %v745, 94
        %v754 = vpop.permute.xlu0 %753
        %755 = vrot.lane.b32.xlu0 %v746, 94
        %v756 = vpop.permute.xlu0 %755
        %757 = vrot.lane.b32.xlu0 %v747, 94
        %v758 = vpop.permute.xlu0 %757
        %759 = vrot.lane.b32.xlu0 %v748, 94
        %v760 = vpop.permute.xlu0 %759
        %v761 = vrot.slane %v754, 4
        %v762 = vrot.slane %v756, 4
        %v763 = vrot.slane %v758, 4
        %v764 = vrot.slane %v760, 4
        %v765 = vsel %vm305, %v761, %v762
        %v766 = vsel %vm482, %v754, %v765
        %v767 = vsel %vm482, %v756, %v762
        %v768 = vsel %vm305, %v763, %v764
        %v769 = vsel %vm482, %v758, %v768
        %v770 = vsel %vm482, %v760, %v764
        %775 = vst [vmem:[#allocation2 + $0x12c] sm:$0xff] %v766
        %776 = vst [vmem:[#allocation2 + $0x134] sm:$0xf] %v767
        %777 = vst [vmem:[#allocation2 + $0x144] sm:$0xff] %v769
        %778 = vst [vmem:[#allocation2 + $0x14c] sm:$0xf] %v770
        %v779 = vld [vmem:[%s566] sm:$0xff]
        %v780 = vld [vmem:[%s566 + $0x8] sm:$0xff]
        %v781 = vld [vmem:[%s566 + $0x10] sm:$0xff]
        %v782 = vld [vmem:[%s566 + $0x18] sm:$0xff]
        %787 = vrot.lane.b32.xlu0 %v779, 93
        %v788 = vpop.permute.xlu0 %787
        %789 = vrot.lane.b32.xlu0 %v780, 93
        %v790 = vpop.permute.xlu0 %789
        %791 = vrot.lane.b32.xlu0 %v781, 93
        %v792 = vpop.permute.xlu0 %791
        %793 = vrot.lane.b32.xlu0 %v782, 93
        %v794 = vpop.permute.xlu0 %793
        %v795 = vrot.slane %v788, 4
        %v796 = vrot.slane %v790, 4
        %v797 = vrot.slane %v792, 4
        %v798 = vrot.slane %v794, 4
        %v799 = vsel %vm305, %v795, %v796
        %v800 = vsel %vm517, %v788, %v799
        %v801 = vsel %vm517, %v790, %v796
        %v802 = vsel %vm305, %v797, %v798
        %v803 = vsel %vm517, %v792, %v802
        %v804 = vsel %vm517, %v794, %v798
        %809 = vst [vmem:[#allocation2 + $0x15c] sm:$0xff] %v800
        %810 = vst [vmem:[#allocation2 + $0x164] sm:$0xf] %v801
        %811 = vst [vmem:[#allocation2 + $0x174] sm:$0xff] %v803
        %812 = vst [vmem:[#allocation2 + $0x17c] sm:$0xf] %v804
        %v813 = vld [vmem:[%s566] sm:$0xff]
        %v814 = vld [vmem:[%s566 + $0x8] sm:$0xff]
        %v815 = vld [vmem:[%s566 + $0x10] sm:$0xff]
        %v816 = vld [vmem:[%s566 + $0x18] sm:$0xff]
        %821 = vrot.lane.b32.xlu0 %v813, 92
        %v822 = vpop.permute.xlu0 %821
        %823 = vrot.lane.b32.xlu0 %v814, 92
        %v824 = vpop.permute.xlu0 %823
        %825 = vrot.lane.b32.xlu0 %v815, 92
        %v826 = vpop.permute.xlu0 %825
        %827 = vrot.lane.b32.xlu0 %v816, 92
        %v828 = vpop.permute.xlu0 %827
        %v829 = vrot.slane %v822, 4
        %v830 = vrot.slane %v824, 4
        %v831 = vrot.slane %v826, 4
        %v832 = vrot.slane %v828, 4
        %v833 = vsel %vm305, %v829, %v830
        %v834 = vsel %vm552, %v822, %v833
        %v835 = vsel %vm552, %v824, %v830
        %v836 = vsel %vm305, %v831, %v832
        %v837 = vsel %vm552, %v826, %v836
        %v838 = vsel %vm552, %v828, %v832
        %843 = vst [vmem:[#allocation2 + $0x18c] sm:$0xff] %v834
        %844 = vst [vmem:[#allocation2 + $0x194] sm:$0xf] %v835
        %845 = vst [vmem:[#allocation2 + $0x1a4] sm:$0xff] %v837
        %846 = vst [vmem:[#allocation2 + $0x1ac] sm:$0xf] %v838
        %v847 = vld [vmem:[#allocation9] sm:$0xff]
        %v848 = vld [vmem:[#allocation9 + $0x8] sm:$0xff]
        %v849 = vld [vmem:[#allocation2] sm:$0xff]
        %v850 = vld [vmem:[#allocation2 + $0x8] sm:$0xff]
        %v851 = vld [vmem:[#allocation2 + $0x10] sm:$0xff]
        %v852 = vld [vmem:[#allocation2 + $0x18] sm:$0xff]
        %v853 = vld [vmem:[#allocation2 + $0x20] sm:$0xff]
        %v854 = vld [vmem:[#allocation2 + $0x28] sm:$0xff]
        %v855 = vld [vmem:[#allocation2 + $0x30] sm:$0xff]
        %v856 = vld [vmem:[#allocation2 + $0x38] sm:$0xff]
        %v857 = vld [vmem:[#allocation2 + $0x40] sm:$0xff]
        %v858 = vld [vmem:[#allocation2 + $0x48] sm:$0xff]
        %v859 = vld [vmem:[#allocation2 + $0x50] sm:$0xff]
        %v860 = vld [vmem:[#allocation2 + $0x58] sm:$0xff]
        %v861 = vld [vmem:[#allocation2 + $0x60] sm:$0xff]
        %v862 = vld [vmem:[#allocation2 + $0x68] sm:$0xff]
        %v863 = vld [vmem:[#allocation2 + $0x70] sm:$0xff]
        %v864 = vld [vmem:[#allocation2 + $0x78] sm:$0xff]
        %v865 = vld [vmem:[#allocation2 + $0x80] sm:$0xff]
        %v866 = vld [vmem:[#allocation2 + $0x88] sm:$0xff]
        %v867 = vld [vmem:[#allocation2 + $0x90] sm:$0xff]
        %v868 = vld [vmem:[#allocation2 + $0x98] sm:$0xff]
        %v869 = vld [vmem:[#allocation2 + $0xa0] sm:$0xff]
        %v870 = vld [vmem:[#allocation2 + $0xa8] sm:$0xff]
        %v871 = vld [vmem:[#allocation2 + $0xb0] sm:$0xff]
        %v872 = vld [vmem:[#allocation2 + $0xb8] sm:$0xff]
        %v873 = vld [vmem:[#allocation2 + $0xc0] sm:$0xff]
        %v874 = vld [vmem:[#allocation2 + $0xc8] sm:$0xff]
        %v875 = vld [vmem:[#allocation2 + $0xd0] sm:$0xff]
        %v876 = vld [vmem:[#allocation2 + $0xd8] sm:$0xff]
        %v877 = vld [vmem:[#allocation2 + $0xe0] sm:$0xff]
        %v878 = vld [vmem:[#allocation2 + $0xe8] sm:$0xff]
        %v879 = vld [vmem:[#allocation2 + $0xf0] sm:$0xff]
        %v880 = vld [vmem:[#allocation2 + $0xf8] sm:$0xff]
        %v881 = vld [vmem:[#allocation2 + $0x100] sm:$0xff]
        %v882 = vld [vmem:[#allocation2 + $0x108] sm:$0xff]
        %v883 = vld [vmem:[#allocation2 + $0x110] sm:$0xff]
        %v884 = vld [vmem:[#allocation2 + $0x118] sm:$0xff]
        %v885 = vld [vmem:[#allocation2 + $0x120] sm:$0xff]
        %v886 = vld [vmem:[#allocation2 + $0x128] sm:$0xff]
        %v887 = vld [vmem:[#allocation2 + $0x130] sm:$0xff]
        %v888 = vld [vmem:[#allocation2 + $0x138] sm:$0xff]
        %v889 = vld [vmem:[#allocation2 + $0x140] sm:$0xff]
        %v890 = vld [vmem:[#allocation2 + $0x148] sm:$0xff]
        %v891 = vld [vmem:[#allocation2 + $0x150] sm:$0xff]
        %v892 = vld [vmem:[#allocation2 + $0x158] sm:$0xff]
        %v893 = vld [vmem:[#allocation2 + $0x160] sm:$0xff]
        %v894 = vld [vmem:[#allocation2 + $0x168] sm:$0xff]
        %v895 = vld [vmem:[#allocation2 + $0x170] sm:$0xff]
        %v896 = vld [vmem:[#allocation2 + $0x178] sm:$0xff]
        %v897 = vld [vmem:[#allocation2 + $0x180] sm:$0xff]
        %v898 = vld [vmem:[#allocation2 + $0x188] sm:$0xff]
        %v899 = vld [vmem:[#allocation2 + $0x190] sm:$0xff]
        %v900 = vld [vmem:[#allocation2 + $0x198] sm:$0xff]
        %v901 = vld [vmem:[#allocation2 + $0x1a0] sm:$0xff]
        %v902 = vld [vmem:[#allocation2 + $0x1a8] sm:$0xff]
        %v905 = vunpack.c.l.b16 %v847
        %v906 = vunpack.c.h.b16 %v847
        %v907 = vunpack.c.l.b16 %v848
        %v908 = vunpack.c.h.b16 %v848
        %v909 = vpack.c.b16 %v907, %v905
        %v910 = vpack.c.b16 %v908, %v906
        %v966 = vunpack.c.l.b16 %v849
        %v967 = vunpack.c.h.b16 %v849
        %v968 = vunpack.c.l.b16 %v850
        %v969 = vunpack.c.h.b16 %v850
        %v970 = vunpack.c.l.b16 %v851
        %v971 = vunpack.c.h.b16 %v851
        %v972 = vunpack.c.l.b16 %v852
        %v973 = vunpack.c.h.b16 %v852
        %v974 = vunpack.c.l.b16 %v853
        %v975 = vunpack.c.h.b16 %v853
        %v976 = vunpack.c.l.b16 %v854
        %v977 = vunpack.c.h.b16 %v854
        %v978 = vunpack.c.l.b16 %v855
        %v979 = vunpack.c.h.b16 %v855
        %v980 = vunpack.c.l.b16 %v856
        %v981 = vunpack.c.h.b16 %v856
        %v982 = vunpack.c.l.b16 %v857
        %v983 = vunpack.c.h.b16 %v857
        %v984 = vunpack.c.l.b16 %v858
        %v985 = vunpack.c.h.b16 %v858
        %v986 = vunpack.c.l.b16 %v859
        %v987 = vunpack.c.h.b16 %v859
        %v988 = vunpack.c.l.b16 %v860
        %v989 = vunpack.c.h.b16 %v860
        %v990 = vunpack.c.l.b16 %v861
        %v991 = vunpack.c.h.b16 %v861
        %v992 = vunpack.c.l.b16 %v862
        %v993 = vunpack.c.h.b16 %v862
        %v994 = vunpack.c.l.b16 %v863
        %v995 = vunpack.c.h.b16 %v863
        %v996 = vunpack.c.l.b16 %v864
        %v997 = vunpack.c.h.b16 %v864
        %v998 = vunpack.c.l.b16 %v865
        %v999 = vunpack.c.h.b16 %v865
        %v1000 = vunpack.c.l.b16 %v866
        %v1001 = vunpack.c.h.b16 %v866
        %v1002 = vunpack.c.l.b16 %v867
        %v1003 = vunpack.c.h.b16 %v867
        %v1004 = vunpack.c.l.b16 %v868
        %v1005 = vunpack.c.h.b16 %v868
        %v1006 = vunpack.c.l.b16 %v869
        %v1007 = vunpack.c.h.b16 %v869
        %v1008 = vunpack.c.l.b16 %v870
        %v1009 = vunpack.c.h.b16 %v870
        %v1010 = vunpack.c.l.b16 %v871
        %v1011 = vunpack.c.h.b16 %v871
        %v1012 = vunpack.c.l.b16 %v872
        %v1013 = vunpack.c.h.b16 %v872
        %v1014 = vunpack.c.l.b16 %v873
        %v1015 = vunpack.c.h.b16 %v873
        %v1016 = vunpack.c.l.b16 %v874
        %v1017 = vunpack.c.h.b16 %v874
        %v1018 = vunpack.c.l.b16 %v875
        %v1019 = vunpack.c.h.b16 %v875
        %v1020 = vunpack.c.l.b16 %v876
        %v1021 = vunpack.c.h.b16 %v876
        %v1022 = vunpack.c.l.b16 %v877
        %v1023 = vunpack.c.h.b16 %v877
        %v1024 = vunpack.c.l.b16 %v878
        %v1025 = vunpack.c.h.b16 %v878
        %v1026 = vunpack.c.l.b16 %v879
        %v1027 = vunpack.c.h.b16 %v879
        %v1028 = vunpack.c.l.b16 %v880
        %v1029 = vunpack.c.h.b16 %v880
        %v1030 = vunpack.c.l.b16 %v881
        %v1031 = vunpack.c.h.b16 %v881
        %v1032 = vunpack.c.l.b16 %v882
        %v1033 = vunpack.c.h.b16 %v882
        %v1034 = vunpack.c.l.b16 %v883
        %v1035 = vunpack.c.h.b16 %v883
        %v1036 = vunpack.c.l.b16 %v884
        %v1037 = vunpack.c.h.b16 %v884
        %v1038 = vunpack.c.l.b16 %v885
        %v1039 = vunpack.c.h.b16 %v885
        %v1040 = vunpack.c.l.b16 %v886
        %v1041 = vunpack.c.h.b16 %v886
        %v1042 = vunpack.c.l.b16 %v887
        %v1043 = vunpack.c.h.b16 %v887
        %v1044 = vunpack.c.l.b16 %v888
        %v1045 = vunpack.c.h.b16 %v888
        %v1046 = vunpack.c.l.b16 %v889
        %v1047 = vunpack.c.h.b16 %v889
        %v1048 = vunpack.c.l.b16 %v890
        %v1049 = vunpack.c.h.b16 %v890
        %v1050 = vunpack.c.l.b16 %v891
        %v1051 = vunpack.c.h.b16 %v891
        %v1052 = vunpack.c.l.b16 %v892
        %v1053 = vunpack.c.h.b16 %v892
        %v1054 = vunpack.c.l.b16 %v893
        %v1055 = vunpack.c.h.b16 %v893
        %v1056 = vunpack.c.l.b16 %v894
        %v1057 = vunpack.c.h.b16 %v894
        %v1058 = vunpack.c.l.b16 %v895
        %v1059 = vunpack.c.h.b16 %v895
        %v1060 = vunpack.c.l.b16 %v896
        %v1061 = vunpack.c.h.b16 %v896
        %v1062 = vunpack.c.l.b16 %v897
        %v1063 = vunpack.c.h.b16 %v897
        %v1064 = vunpack.c.l.b16 %v898
        %v1065 = vunpack.c.h.b16 %v898
        %v1066 = vunpack.c.l.b16 %v899
        %v1067 = vunpack.c.h.b16 %v899
        %v1068 = vunpack.c.l.b16 %v900
        %v1069 = vunpack.c.h.b16 %v900
        %v1070 = vunpack.c.l.b16 %v901
        %v1071 = vunpack.c.h.b16 %v901
        %v1072 = vunpack.c.l.b16 %v902
        %v1073 = vunpack.c.h.b16 %v902
        %v1074 = vpack.c.b16 %v972, %v966
        %v1075 = vpack.c.b16 %v973, %v967
        %v1076 = vpack.c.b16 %v974, %v968
        %v1077 = vpack.c.b16 %v975, %v969
        %v1078 = vpack.c.b16 %v976, %v970
        %v1079 = vpack.c.b16 %v977, %v971
        %v1080 = vpack.c.b16 %v984, %v978
        %v1081 = vpack.c.b16 %v985, %v979
        %v1082 = vpack.c.b16 %v986, %v980
        %v1083 = vpack.c.b16 %v987, %v981
        %v1084 = vpack.c.b16 %v988, %v982
        %v1085 = vpack.c.b16 %v989, %v983
        %v1086 = vpack.c.b16 %v996, %v990
        %v1087 = vpack.c.b16 %v997, %v991
        %v1088 = vpack.c.b16 %v998, %v992
        %v1089 = vpack.c.b16 %v999, %v993
        %v1090 = vpack.c.b16 %v1000, %v994
        %v1091 = vpack.c.b16 %v1001, %v995
        %v1092 = vpack.c.b16 %v1008, %v1002
        %v1093 = vpack.c.b16 %v1009, %v1003
        %v1094 = vpack.c.b16 %v1010, %v1004
        %v1095 = vpack.c.b16 %v1011, %v1005
        %v1096 = vpack.c.b16 %v1012, %v1006
        %v1097 = vpack.c.b16 %v1013, %v1007
        %v1098 = vpack.c.b16 %v1020, %v1014
        %v1099 = vpack.c.b16 %v1021, %v1015
        %v1100 = vpack.c.b16 %v1022, %v1016
        %v1101 = vpack.c.b16 %v1023, %v1017
        %v1102 = vpack.c.b16 %v1024, %v1018
        %v1103 = vpack.c.b16 %v1025, %v1019
        %v1104 = vpack.c.b16 %v1032, %v1026
        %v1105 = vpack.c.b16 %v1033, %v1027
        %v1106 = vpack.c.b16 %v1034, %v1028
        %v1107 = vpack.c.b16 %v1035, %v1029
        %v1108 = vpack.c.b16 %v1036, %v1030
        %v1109 = vpack.c.b16 %v1037, %v1031
        %v1110 = vpack.c.b16 %v1044, %v1038
        %v1111 = vpack.c.b16 %v1045, %v1039
        %v1112 = vpack.c.b16 %v1046, %v1040
        %v1113 = vpack.c.b16 %v1047, %v1041
        %v1114 = vpack.c.b16 %v1048, %v1042
        %v1115 = vpack.c.b16 %v1049, %v1043
        %v1116 = vpack.c.b16 %v1056, %v1050
        %v1117 = vpack.c.b16 %v1057, %v1051
        %v1118 = vpack.c.b16 %v1058, %v1052
        %v1119 = vpack.c.b16 %v1059, %v1053
        %v1120 = vpack.c.b16 %v1060, %v1054
        %v1121 = vpack.c.b16 %v1061, %v1055
        %v1122 = vpack.c.b16 %v1068, %v1062
        %v1123 = vpack.c.b16 %v1069, %v1063
        %v1124 = vpack.c.b16 %v1070, %v1064
        %v1125 = vpack.c.b16 %v1071, %v1065
        %v1126 = vpack.c.b16 %v1072, %v1066
        %v1127 = vpack.c.b16 %v1073, %v1067
        %vm1182 = vcmask 130048
        %v1184 = vsel %vm1182, %v910, 0
        %1186 = vmatpush.bf16.msra.mxu0 %v1116
        %1187 = vmatpush.bf16.msra.mxu0 %v1110
        %1188 = vmatpush.bf16.msra.mxu0 %v1104
        %1189 = vmatpush.bf16.msra.mxu0 %v1098
        %1190 = vmatpush.bf16.msra.mxu0 %v1092
        %1191 = vmatpush.bf16.msra.mxu0 %v1086
        %1192 = vmatpush.bf16.msra.mxu0 %v1080
        %1193 = vmatpush.bf16.msra.mxu0 %v1074
        %1194 = vmatmul.bf16.gmra.mxu0 %v909
        %v1195 = vpop.f32.mrf.mxu0
        %v1196 = vadd.f32 0.0, %v1195
        %v1197 = vpop.f32.mrf.mxu0
        %v1198 = vadd.f32 0.0, %v1197
        %1199 = vdwg.mxu0
        %1200 = vmatpush.bf16.msra.mxu0 0
        %1201 = vmatpush.bf16.msra.mxu0 0
        %1202 = vmatpush.bf16.msra.mxu0 0
        %1203 = vmatpush.bf16.msra.mxu0 0
        %1204 = vmatpush.bf16.msra.mxu0 0
        %1205 = vmatpush.bf16.msra.mxu0 0
        %1206 = vmatpush.bf16.msra.mxu0 0
        %1207 = vmatpush.bf16.msra.mxu0 %v1122
        %1208 = vmatmul.bf16.gmra.mxu0 %v1184
        %v1209 = vpop.f32.mrf.mxu0
        %v1210 = vadd.f32 %v1196, %v1209
        %v1211 = vpop.f32.mrf.mxu0
        %v1212 = vadd.f32 %v1198, %v1211
        %1213 = vdwg.mxu0
        %1214 = vmatpush.bf16.msra.mxu0 %v1117
        %1215 = vmatpush.bf16.msra.mxu0 %v1111
        %1216 = vmatpush.bf16.msra.mxu0 %v1105
        %1217 = vmatpush.bf16.msra.mxu0 %v1099
        %1218 = vmatpush.bf16.msra.mxu0 %v1093
        %1219 = vmatpush.bf16.msra.mxu0 %v1087
        %1220 = vmatpush.bf16.msra.mxu0 %v1081
        %1221 = vmatpush.bf16.msra.mxu0 %v1075
        %1222 = vmatmul.bf16.gmra.mxu0 %v909
        %v1223 = vpop.f32.mrf.mxu0
        %v1224 = vadd.f32 0.0, %v1223
        %v1225 = vpop.f32.mrf.mxu0
        %v1226 = vadd.f32 0.0, %v1225
        %1227 = vdwg.mxu0
        %1228 = vmatpush.bf16.msra.mxu0 0
        %1229 = vmatpush.bf16.msra.mxu0 0
        %1230 = vmatpush.bf16.msra.mxu0 0
        %1231 = vmatpush.bf16.msra.mxu0 0
        %1232 = vmatpush.bf16.msra.mxu0 0
        %1233 = vmatpush.bf16.msra.mxu0 0
        %1234 = vmatpush.bf16.msra.mxu0 0
        %1235 = vmatpush.bf16.msra.mxu0 %v1123
        %1236 = vmatmul.bf16.gmra.mxu0 %v1184
        %v1237 = vpop.f32.mrf.mxu0
        %v1238 = vadd.f32 %v1224, %v1237
        %v1239 = vpop.f32.mrf.mxu0
        %v1240 = vadd.f32 %v1226, %v1239
        %1241 = vdwg.mxu0
        %1242 = vmatpush.bf16.msra.mxu0 %v1118
        %1243 = vmatpush.bf16.msra.mxu0 %v1112
        %1244 = vmatpush.bf16.msra.mxu0 %v1106
        %1245 = vmatpush.bf16.msra.mxu0 %v1100
        %1246 = vmatpush.bf16.msra.mxu0 %v1094
        %1247 = vmatpush.bf16.msra.mxu0 %v1088
        %1248 = vmatpush.bf16.msra.mxu0 %v1082
        %1249 = vmatpush.bf16.msra.mxu0 %v1076
        %1250 = vmatmul.bf16.gmra.mxu0 %v909
        %v1251 = vpop.f32.mrf.mxu0
        %v1252 = vadd.f32 0.0, %v1251
        %v1253 = vpop.f32.mrf.mxu0
        %v1254 = vadd.f32 0.0, %v1253
        %1255 = vdwg.mxu0
        %1256 = vmatpush.bf16.msra.mxu0 0
        %1257 = vmatpush.bf16.msra.mxu0 0
        %1258 = vmatpush.bf16.msra.mxu0 0
        %1259 = vmatpush.bf16.msra.mxu0 0
        %1260 = vmatpush.bf16.msra.mxu0 0
        %1261 = vmatpush.bf16.msra.mxu0 0
        %1262 = vmatpush.bf16.msra.mxu0 0
        %1263 = vmatpush.bf16.msra.mxu0 %v1124
        %1264 = vmatmul.bf16.gmra.mxu0 %v1184
        %v1265 = vpop.f32.mrf.mxu0
        %v1266 = vadd.f32 %v1252, %v1265
        %v1267 = vpop.f32.mrf.mxu0
        %v1268 = vadd.f32 %v1254, %v1267
        %1269 = vdwg.mxu0
        %1270 = vmatpush.bf16.msra.mxu0 %v1119
        %1271 = vmatpush.bf16.msra.mxu0 %v1113
        %1272 = vmatpush.bf16.msra.mxu0 %v1107
        %1273 = vmatpush.bf16.msra.mxu0 %v1101
        %1274 = vmatpush.bf16.msra.mxu0 %v1095
        %1275 = vmatpush.bf16.msra.mxu0 %v1089
        %1276 = vmatpush.bf16.msra.mxu0 %v1083
        %1277 = vmatpush.bf16.msra.mxu0 %v1077
        %1278 = vmatmul.bf16.gmra.mxu0 %v909
        %v1279 = vpop.f32.mrf.mxu0
        %v1280 = vadd.f32 0.0, %v1279
        %v1281 = vpop.f32.mrf.mxu0
        %v1282 = vadd.f32 0.0, %v1281
        %1283 = vdwg.mxu0
        %1284 = vmatpush.bf16.msra.mxu0 0
        %1285 = vmatpush.bf16.msra.mxu0 0
        %1286 = vmatpush.bf16.msra.mxu0 0
        %1287 = vmatpush.bf16.msra.mxu0 0
        %1288 = vmatpush.bf16.msra.mxu0 0
        %1289 = vmatpush.bf16.msra.mxu0 0
        %1290 = vmatpush.bf16.msra.mxu0 0
        %1291 = vmatpush.bf16.msra.mxu0 %v1125
        %1292 = vmatmul.bf16.gmra.mxu0 %v1184
        %v1293 = vpop.f32.mrf.mxu0
        %v1294 = vadd.f32 %v1280, %v1293
        %v1295 = vpop.f32.mrf.mxu0
        %v1296 = vadd.f32 %v1282, %v1295
        %1297 = vdwg.mxu0
        %1298 = vmatpush.bf16.msra.mxu0 %v1120
        %1299 = vmatpush.bf16.msra.mxu0 %v1114
        %1300 = vmatpush.bf16.msra.mxu0 %v1108
        %1301 = vmatpush.bf16.msra.mxu0 %v1102
        %1302 = vmatpush.bf16.msra.mxu0 %v1096
        %1303 = vmatpush.bf16.msra.mxu0 %v1090
        %1304 = vmatpush.bf16.msra.mxu0 %v1084
        %1305 = vmatpush.bf16.msra.mxu0 %v1078
        %1306 = vmatmul.bf16.gmra.mxu0 %v909
        %v1307 = vpop.f32.mrf.mxu0
        %v1308 = vadd.f32 0.0, %v1307
        %v1309 = vpop.f32.mrf.mxu0
        %v1310 = vadd.f32 0.0, %v1309
        %1311 = vdwg.mxu0
        %1312 = vmatpush.bf16.msra.mxu0 0
        %1313 = vmatpush.bf16.msra.mxu0 0
        %1314 = vmatpush.bf16.msra.mxu0 0
        %1315 = vmatpush.bf16.msra.mxu0 0
        %1316 = vmatpush.bf16.msra.mxu0 0
        %1317 = vmatpush.bf16.msra.mxu0 0
        %1318 = vmatpush.bf16.msra.mxu0 0
        %1319 = vmatpush.bf16.msra.mxu0 %v1126
        %1320 = vmatmul.bf16.gmra.mxu0 %v1184
        %v1321 = vpop.f32.mrf.mxu0
        %v1322 = vadd.f32 %v1308, %v1321
        %v1323 = vpop.f32.mrf.mxu0
        %v1324 = vadd.f32 %v1310, %v1323
        %1325 = vdwg.mxu0
        %1326 = vmatpush.bf16.msra.mxu0 %v1121
        %1327 = vmatpush.bf16.msra.mxu0 %v1115
        %1328 = vmatpush.bf16.msra.mxu0 %v1109
        %1329 = vmatpush.bf16.msra.mxu0 %v1103
        %1330 = vmatpush.bf16.msra.mxu0 %v1097
        %1331 = vmatpush.bf16.msra.mxu0 %v1091
        %1332 = vmatpush.bf16.msra.mxu0 %v1085
        %1333 = vmatpush.bf16.msra.mxu0 %v1079
        %1334 = vmatmul.bf16.gmra.mxu0 %v909
        %v1335 = vpop.f32.mrf.mxu0
        %v1336 = vadd.f32 0.0, %v1335
        %v1337 = vpop.f32.mrf.mxu0
        %v1338 = vadd.f32 0.0, %v1337
        %1339 = vdwg.mxu0
        %1340 = vmatpush.bf16.msra.mxu0 0
        %1341 = vmatpush.bf16.msra.mxu0 0
        %1342 = vmatpush.bf16.msra.mxu0 0
        %1343 = vmatpush.bf16.msra.mxu0 0
        %1344 = vmatpush.bf16.msra.mxu0 0
        %1345 = vmatpush.bf16.msra.mxu0 0
        %1346 = vmatpush.bf16.msra.mxu0 0
        %1347 = vmatpush.bf16.msra.mxu0 %v1127
        %1348 = vmatmul.bf16.gmra.mxu0 %v1184
        %v1349 = vpop.f32.mrf.mxu0
        %v1350 = vadd.f32 %v1336, %v1349
        %v1351 = vpop.f32.mrf.mxu0
        %v1352 = vadd.f32 %v1338, %v1351
        %1353 = vdwg.mxu0
        %v1354 = vmax.f32 %v1210, 0.0
        %v1355 = vmax.f32 %v1238, 0.0
        %v1356 = vmax.f32 %v1266, 0.0
        %v1357 = vmax.f32 %v1294, 0.0
        %v1358 = vmax.f32 %v1322, 0.0
        %v1359 = vmax.f32 %v1350, 0.0
        %v1360 = vmax.f32 %v1212, 0.0
        %v1361 = vmax.f32 %v1240, 0.0
        %v1362 = vmax.f32 %v1268, 0.0
        %v1363 = vmax.f32 %v1296, 0.0
        %v1364 = vmax.f32 %v1324, 0.0
        %v1365 = vmax.f32 %v1352, 0.0
        %v1367 = vperm.slane %v276, 0
        %v1368 = vperm.slane %v276, 1
        %v1369 = vperm.slane %v276, 2
        %v1373 = vmul.f32 %v1354, %v1367
        %v1374 = vmul.f32 %v1355, %v1368
        %v1375 = vmul.f32 %v1356, %v1369
        %v1376 = vmul.f32 %v1360, %v1367
        %v1377 = vmul.f32 %v1361, %v1368
        %v1378 = vmul.f32 %v1362, %v1369
        %v1379 = vpack.c.bf16 %v1374, %v1373
        %v1380 = vpack.c.bf16 %v1375, %v1375
        %v1381 = vpack.c.bf16 %v1377, %v1376
        %v1382 = vpack.c.bf16 %v1378, %v1378
        %1387 = vrot.lane.b32.xlu0 %v1379, 18
        %v1388 = vpop.permute.xlu0 %1387
        %1389 = vrot.lane.b32.xlu0 %v1380, 18
        %v1390 = vpop.permute.xlu0 %1389
        %1391 = vrot.lane.b32.xlu0 %v1381, 18
        %v1392 = vpop.permute.xlu0 %1391
        %1393 = vrot.lane.b32.xlu0 %v1382, 18
        %v1394 = vpop.permute.xlu0 %1393
        %v1395 = vrot.slane %v1388, 4
        %v1396 = vrot.slane %v1390, 4
        %v1397 = vrot.slane %v1392, 4
        %v1398 = vrot.slane %v1394, 4
        %vm1399 = vcmask 146432
        %v1400 = vsel %vm1399, %v1395, %v1388
        %v1401 = vsel %vm305, %v1395, %v1396
        %v1402 = vsel %vm1399, %v1401, %v1390
        %v1403 = vsel %vm1399, %v1397, %v1392
        %v1404 = vsel %vm305, %v1397, %v1398
        %v1405 = vsel %vm1399, %v1404, %v1394
        %vm1410 = vcmask 1043600
        %vm1411 = vcmask 1047556
        %vm1412 = vmor %vm1411, %vm1410
        %1413 = vst.msk [vmem:[#allocation3] sm:$0xff] %vm1412, %v1400
        %vm1414 = vcmask 1043456
        %vm1415 = vcmask 146436
        %vm1416 = vmor %vm1415, %vm1414
        %1417 = vst.msk [vmem:[#allocation3 + $0x8] sm:$0xff] %vm1416, %v1402
        %1418 = vst.msk [vmem:[#allocation3 + $0x10] sm:$0xff] %vm1412, %v1403
        %1419 = vst.msk [vmem:[#allocation3 + $0x18] sm:$0xff] %vm1416, %v1405
        %v1420 = vmul.f32 %v1357, %v1367
        %v1421 = vmul.f32 %v1358, %v1368
        %v1422 = vmul.f32 %v1359, %v1369
        %v1423 = vmul.f32 %v1363, %v1367
        %v1424 = vmul.f32 %v1364, %v1368
        %v1425 = vmul.f32 %v1365, %v1369
        %v1426 = vpack.c.bf16 %v1421, %v1420
        %v1427 = vpack.c.bf16 %v1422, %v1422
        %v1428 = vpack.c.bf16 %v1424, %v1423
        %v1429 = vpack.c.bf16 %v1425, %v1425
        %1434 = vrot.lane.b32.xlu0 %v1426, 18
        %v1435 = vpop.permute.xlu0 %1434
        %1436 = vrot.lane.b32.xlu0 %v1427, 18
        %v1437 = vpop.permute.xlu0 %1436
        %1438 = vrot.lane.b32.xlu0 %v1428, 18
        %v1439 = vpop.permute.xlu0 %1438
        %1440 = vrot.lane.b32.xlu0 %v1429, 18
        %v1441 = vpop.permute.xlu0 %1440
        %v1442 = vrot.slane %v1435, 4
        %v1443 = vrot.slane %v1437, 4
        %v1444 = vrot.slane %v1439, 4
        %v1445 = vrot.slane %v1441, 4
        %v1446 = vsel %vm1399, %v1442, %v1435
        %v1447 = vsel %vm305, %v1442, %v1443
        %v1448 = vsel %vm1399, %v1447, %v1437
        %v1449 = vsel %vm1399, %v1444, %v1439
        %v1450 = vsel %vm305, %v1444, %v1445
        %v1451 = vsel %vm1399, %v1450, %v1441
        %s1456 = scalar_lea.vmem [#allocation3], 32
        %1457 = vst.msk [vmem:[%s1456] sm:$0xff] %vm1412, %v1446
        %1458 = vst.msk [vmem:[%s1456 + $0x8] sm:$0xff] %vm1416, %v1448
        %1459 = vst.msk [vmem:[%s1456 + $0x10] sm:$0xff] %vm1412, %v1449
        %1460 = vst.msk [vmem:[%s1456 + $0x18] sm:$0xff] %vm1416, %v1451
        %v1461 = vld [vmem:[#allocation3] sm:$0xff]
        %v1462 = vld [vmem:[#allocation3 + $0x8] sm:$0xf]
        %v1463 = vld [vmem:[#allocation3 + $0x10] sm:$0xff]
        %v1464 = vld [vmem:[#allocation3 + $0x18] sm:$0xf]
        %1465 = vst [vmem:[#allocation2] sm:$0xff] %v1461
        %1466 = vst [vmem:[#allocation2 + $0x8] sm:$0xf] %v1462
        %1467 = vst [vmem:[#allocation2 + $0x18] sm:$0xff] %v1463
        %1468 = vst [vmem:[#allocation2 + $0x20] sm:$0xf] %v1464
        %v1469 = vld [vmem:[#allocation3] sm:$0xff]
        %v1470 = vld [vmem:[#allocation3 + $0x8] sm:$0xff]
        %v1471 = vld [vmem:[#allocation3 + $0x10] sm:$0xff]
        %v1472 = vld [vmem:[#allocation3 + $0x18] sm:$0xff]
        %1477 = vrot.lane.b32.xlu0 %v1469, 127
        %v1478 = vpop.permute.xlu0 %1477
        %1479 = vrot.lane.b32.xlu0 %v1470, 127
        %v1480 = vpop.permute.xlu0 %1479
        %1481 = vrot.lane.b32.xlu0 %v1471, 127
        %v1482 = vpop.permute.xlu0 %1481
        %1483 = vrot.lane.b32.xlu0 %v1472, 127
        %v1484 = vpop.permute.xlu0 %1483
        %v1485 = vrot.slane %v1478, 4
        %v1486 = vrot.slane %v1480, 4
        %v1487 = vrot.slane %v1482, 4
        %v1488 = vrot.slane %v1484, 4
        %v1489 = vsel %vm305, %v1485, %v1486
        %v1490 = vsel %vm307, %v1478, %v1489
        %v1491 = vsel %vm307, %v1480, %v1486
        %v1492 = vsel %vm305, %v1487, %v1488
        %v1493 = vsel %vm307, %v1482, %v1492
        %v1494 = vsel %vm307, %v1484, %v1488
        %1499 = vst [vmem:[#allocation2 + $0x30] sm:$0xff] %v1490
        %1500 = vst [vmem:[#allocation2 + $0x38] sm:$0xf] %v1491
        %1501 = vst [vmem:[#allocation2 + $0x48] sm:$0xff] %v1493
        %1502 = vst [vmem:[#allocation2 + $0x50] sm:$0xf] %v1494
        %v1503 = vld [vmem:[#allocation3] sm:$0xff]
        %v1504 = vld [vmem:[#allocation3 + $0x8] sm:$0xff]
        %v1505 = vld [vmem:[#allocation3 + $0x10] sm:$0xff]
        %v1506 = vld [vmem:[#allocation3 + $0x18] sm:$0xff]
        %1511 = vrot.lane.b32.xlu0 %v1503, 126
        %v1512 = vpop.permute.xlu0 %1511
        %1513 = vrot.lane.b32.xlu0 %v1504, 126
        %v1514 = vpop.permute.xlu0 %1513
        %1515 = vrot.lane.b32.xlu0 %v1505, 126
        %v1516 = vpop.permute.xlu0 %1515
        %1517 = vrot.lane.b32.xlu0 %v1506, 126
        %v1518 = vpop.permute.xlu0 %1517
        %v1519 = vrot.slane %v1512, 4
        %v1520 = vrot.slane %v1514, 4
        %v1521 = vrot.slane %v1516, 4
        %v1522 = vrot.slane %v1518, 4
        %v1523 = vsel %vm305, %v1519, %v1520
        %v1524 = vsel %vm342, %v1512, %v1523
        %v1525 = vsel %vm342, %v1514, %v1520
        %v1526 = vsel %vm305, %v1521, %v1522
        %v1527 = vsel %vm342, %v1516, %v1526
        %v1528 = vsel %vm342, %v1518, %v1522
        %1533 = vst [vmem:[#allocation2 + $0x60] sm:$0xff] %v1524
        %1534 = vst [vmem:[#allocation2 + $0x68] sm:$0xf] %v1525
        %1535 = vst [vmem:[#allocation2 + $0x78] sm:$0xff] %v1527
        %1536 = vst [vmem:[#allocation2 + $0x80] sm:$0xf] %v1528
        %v1537 = vld [vmem:[#allocation3] sm:$0xff]
        %v1538 = vld [vmem:[#allocation3 + $0x8] sm:$0xff]
        %v1539 = vld [vmem:[#allocation3 + $0x10] sm:$0xff]
        %v1540 = vld [vmem:[#allocation3 + $0x18] sm:$0xff]
        %1545 = vrot.lane.b32.xlu0 %v1537, 111
        %v1546 = vpop.permute.xlu0 %1545
        %1547 = vrot.lane.b32.xlu0 %v1538, 111
        %v1548 = vpop.permute.xlu0 %1547
        %1549 = vrot.lane.b32.xlu0 %v1539, 111
        %v1550 = vpop.permute.xlu0 %1549
        %1551 = vrot.lane.b32.xlu0 %v1540, 111
        %v1552 = vpop.permute.xlu0 %1551
        %v1553 = vrot.slane %v1546, 4
        %v1554 = vrot.slane %v1548, 4
        %v1555 = vrot.slane %v1550, 4
        %v1556 = vrot.slane %v1552, 4
        %v1557 = vsel %vm305, %v1553, %v1554
        %v1558 = vsel %vm377, %v1546, %v1557
        %v1559 = vsel %vm377, %v1548, %v1554
        %v1560 = vsel %vm305, %v1555, %v1556
        %v1561 = vsel %vm377, %v1550, %v1560
        %v1562 = vsel %vm377, %v1552, %v1556
        %1567 = vst [vmem:[#allocation2 + $0x90] sm:$0xff] %v1558
        %1568 = vst [vmem:[#allocation2 + $0x98] sm:$0xf] %v1559
        %1569 = vst [vmem:[#allocation2 + $0xa8] sm:$0xff] %v1561
        %1570 = vst [vmem:[#allocation2 + $0xb0] sm:$0xf] %v1562
        %v1571 = vld [vmem:[#allocation3] sm:$0xff]
        %v1572 = vld [vmem:[#allocation3 + $0x8] sm:$0xff]
        %v1573 = vld [vmem:[#allocation3 + $0x10] sm:$0xff]
        %v1574 = vld [vmem:[#allocation3 + $0x18] sm:$0xff]
        %1579 = vrot.lane.b32.xlu0 %v1571, 110
        %v1580 = vpop.permute.xlu0 %1579
        %1581 = vrot.lane.b32.xlu0 %v1572, 110
        %v1582 = vpop.permute.xlu0 %1581
        %1583 = vrot.lane.b32.xlu0 %v1573, 110
        %v1584 = vpop.permute.xlu0 %1583
        %1585 = vrot.lane.b32.xlu0 %v1574, 110
        %v1586 = vpop.permute.xlu0 %1585
        %v1587 = vrot.slane %v1580, 4
        %v1588 = vrot.slane %v1582, 4
        %v1589 = vrot.slane %v1584, 4
        %v1590 = vrot.slane %v1586, 4
        %v1591 = vsel %vm305, %v1587, %v1588
        %v1592 = vsel %vm412, %v1580, %v1591
        %v1593 = vsel %vm412, %v1582, %v1588
        %v1594 = vsel %vm305, %v1589, %v1590
        %v1595 = vsel %vm412, %v1584, %v1594
        %v1596 = vsel %vm412, %v1586, %v1590
        %1601 = vst [vmem:[#allocation2 + $0xc0] sm:$0xff] %v1592
        %1602 = vst [vmem:[#allocation2 + $0xc8] sm:$0xf] %v1593
        %1603 = vst [vmem:[#allocation2 + $0xd8] sm:$0xff] %v1595
        %1604 = vst [vmem:[#allocation2 + $0xe0] sm:$0xf] %v1596
        %v1605 = vld [vmem:[#allocation3] sm:$0xff]
        %v1606 = vld [vmem:[#allocation3 + $0x8] sm:$0xff]
        %v1607 = vld [vmem:[#allocation3 + $0x10] sm:$0xff]
        %v1608 = vld [vmem:[#allocation3 + $0x18] sm:$0xff]
        %1613 = vrot.lane.b32.xlu0 %v1605, 109
        %v1614 = vpop.permute.xlu0 %1613
        %1615 = vrot.lane.b32.xlu0 %v1606, 109
        %v1616 = vpop.permute.xlu0 %1615
        %1617 = vrot.lane.b32.xlu0 %v1607, 109
        %v1618 = vpop.permute.xlu0 %1617
        %1619 = vrot.lane.b32.xlu0 %v1608, 109
        %v1620 = vpop.permute.xlu0 %1619
        %v1621 = vrot.slane %v1614, 4
        %v1622 = vrot.slane %v1616, 4
        %v1623 = vrot.slane %v1618, 4
        %v1624 = vrot.slane %v1620, 4
        %v1625 = vsel %vm305, %v1621, %v1622
        %v1626 = vsel %vm447, %v1614, %v1625
        %v1627 = vsel %vm447, %v1616, %v1622
        %v1628 = vsel %vm305, %v1623, %v1624
        %v1629 = vsel %vm447, %v1618, %v1628
        %v1630 = vsel %vm447, %v1620, %v1624
        %1635 = vst [vmem:[#allocation2 + $0xf0] sm:$0xff] %v1626
        %1636 = vst [vmem:[#allocation2 + $0xf8] sm:$0xf] %v1627
        %1637 = vst [vmem:[#allocation2 + $0x108] sm:$0xff] %v1629
        %1638 = vst [vmem:[#allocation2 + $0x110] sm:$0xf] %v1630
        %v1639 = vld [vmem:[#allocation3] sm:$0xff]
        %v1640 = vld [vmem:[#allocation3 + $0x8] sm:$0xff]
        %v1641 = vld [vmem:[#allocation3 + $0x10] sm:$0xff]
        %v1642 = vld [vmem:[#allocation3 + $0x18] sm:$0xff]
        %1647 = vrot.lane.b32.xlu0 %v1639, 94
        %v1648 = vpop.permute.xlu0 %1647
        %1649 = vrot.lane.b32.xlu0 %v1640, 94
        %v1650 = vpop.permute.xlu0 %1649
        %1651 = vrot.lane.b32.xlu0 %v1641, 94
        %v1652 = vpop.permute.xlu0 %1651
        %1653 = vrot.lane.b32.xlu0 %v1642, 94
        %v1654 = vpop.permute.xlu0 %1653
        %v1655 = vrot.slane %v1648, 4
        %v1656 = vrot.slane %v1650, 4
        %v1657 = vrot.slane %v1652, 4
        %v1658 = vrot.slane %v1654, 4
        %v1659 = vsel %vm305, %v1655, %v1656
        %v1660 = vsel %vm482, %v1648, %v1659
        %v1661 = vsel %vm482, %v1650, %v1656
        %v1662 = vsel %vm305, %v1657, %v1658
        %v1663 = vsel %vm482, %v1652, %v1662
        %v1664 = vsel %vm482, %v1654, %v1658
        %1669 = vst [vmem:[#allocation2 + $0x120] sm:$0xff] %v1660
        %1670 = vst [vmem:[#allocation2 + $0x128] sm:$0xf] %v1661
        %1671 = vst [vmem:[#allocation2 + $0x138] sm:$0xff] %v1663
        %1672 = vst [vmem:[#allocation2 + $0x140] sm:$0xf] %v1664
        %v1673 = vld [vmem:[#allocation3] sm:$0xff]
        %v1674 = vld [vmem:[#allocation3 + $0x8] sm:$0xff]
        %v1675 = vld [vmem:[#allocation3 + $0x10] sm:$0xff]
        %v1676 = vld [vmem:[#allocation3 + $0x18] sm:$0xff]
        %1681 = vrot.lane.b32.xlu0 %v1673, 93
        %v1682 = vpop.permute.xlu0 %1681
        %1683 = vrot.lane.b32.xlu0 %v1674, 93
        %v1684 = vpop.permute.xlu0 %1683
        %1685 = vrot.lane.b32.xlu0 %v1675, 93
        %v1686 = vpop.permute.xlu0 %1685
        %1687 = vrot.lane.b32.xlu0 %v1676, 93
        %v1688 = vpop.permute.xlu0 %1687
        %v1689 = vrot.slane %v1682, 4
        %v1690 = vrot.slane %v1684, 4
        %v1691 = vrot.slane %v1686, 4
        %v1692 = vrot.slane %v1688, 4
        %v1693 = vsel %vm305, %v1689, %v1690
        %v1694 = vsel %vm517, %v1682, %v1693
        %v1695 = vsel %vm517, %v1684, %v1690
        %v1696 = vsel %vm305, %v1691, %v1692
        %v1697 = vsel %vm517, %v1686, %v1696
        %v1698 = vsel %vm517, %v1688, %v1692
        %1703 = vst [vmem:[#allocation2 + $0x150] sm:$0xff] %v1694
        %1704 = vst [vmem:[#allocation2 + $0x158] sm:$0xf] %v1695
        %1705 = vst [vmem:[#allocation2 + $0x168] sm:$0xff] %v1697
        %1706 = vst [vmem:[#allocation2 + $0x170] sm:$0xf] %v1698
        %v1707 = vld [vmem:[#allocation3] sm:$0xff]
        %v1708 = vld [vmem:[#allocation3 + $0x8] sm:$0xff]
        %v1709 = vld [vmem:[#allocation3 + $0x10] sm:$0xff]
        %v1710 = vld [vmem:[#allocation3 + $0x18] sm:$0xff]
        %1715 = vrot.lane.b32.xlu0 %v1707, 92
        %v1716 = vpop.permute.xlu0 %1715
        %1717 = vrot.lane.b32.xlu0 %v1708, 92
        %v1718 = vpop.permute.xlu0 %1717
        %1719 = vrot.lane.b32.xlu0 %v1709, 92
        %v1720 = vpop.permute.xlu0 %1719
        %1721 = vrot.lane.b32.xlu0 %v1710, 92
        %v1722 = vpop.permute.xlu0 %1721
        %v1723 = vrot.slane %v1716, 4
        %v1724 = vrot.slane %v1718, 4
        %v1725 = vrot.slane %v1720, 4
        %v1726 = vrot.slane %v1722, 4
        %v1727 = vsel %vm305, %v1723, %v1724
        %v1728 = vsel %vm552, %v1716, %v1727
        %v1729 = vsel %vm552, %v1718, %v1724
        %v1730 = vsel %vm305, %v1725, %v1726
        %v1731 = vsel %vm552, %v1720, %v1730
        %v1732 = vsel %vm552, %v1722, %v1726
        %1737 = vst [vmem:[#allocation2 + $0x180] sm:$0xff] %v1728
        %1738 = vst [vmem:[#allocation2 + $0x188] sm:$0xf] %v1729
        %1739 = vst [vmem:[#allocation2 + $0x198] sm:$0xff] %v1731
        %1740 = vst [vmem:[#allocation2 + $0x1a0] sm:$0xf] %v1732
        %v1741 = vld [vmem:[%s1456] sm:$0xff]
        %v1742 = vld [vmem:[%s1456 + $0x8] sm:$0xf]
        %v1743 = vld [vmem:[%s1456 + $0x10] sm:$0xff]
        %v1744 = vld [vmem:[%s1456 + $0x18] sm:$0xf]
        %1745 = vst [vmem:[#allocation2 + $0xc] sm:$0xff] %v1741
        %1746 = vst [vmem:[#allocation2 + $0x14] sm:$0xf] %v1742
        %1747 = vst [vmem:[#allocation2 + $0x24] sm:$0xff] %v1743
        %1748 = vst [vmem:[#allocation2 + $0x2c] sm:$0xf] %v1744
        %v1749 = vld [vmem:[%s1456] sm:$0xff]
        %v1750 = vld [vmem:[%s1456 + $0x8] sm:$0xff]
        %v1751 = vld [vmem:[%s1456 + $0x10] sm:$0xff]
        %v1752 = vld [vmem:[%s1456 + $0x18] sm:$0xff]
        %1757 = vrot.lane.b32.xlu0 %v1749, 127
        %v1758 = vpop.permute.xlu0 %1757
        %1759 = vrot.lane.b32.xlu0 %v1750, 127
        %v1760 = vpop.permute.xlu0 %1759
        %1761 = vrot.lane.b32.xlu0 %v1751, 127
        %v1762 = vpop.permute.xlu0 %1761
        %1763 = vrot.lane.b32.xlu0 %v1752, 127
        %v1764 = vpop.permute.xlu0 %1763
        %v1765 = vrot.slane %v1758, 4
        %v1766 = vrot.slane %v1760, 4
        %v1767 = vrot.slane %v1762, 4
        %v1768 = vrot.slane %v1764, 4
        %v1769 = vsel %vm305, %v1765, %v1766
        %v1770 = vsel %vm307, %v1758, %v1769
        %v1771 = vsel %vm307, %v1760, %v1766
        %v1772 = vsel %vm305, %v1767, %v1768
        %v1773 = vsel %vm307, %v1762, %v1772
        %v1774 = vsel %vm307, %v1764, %v1768
        %1779 = vst [vmem:[#allocation2 + $0x3c] sm:$0xff] %v1770
        %1780 = vst [vmem:[#allocation2 + $0x44] sm:$0xf] %v1771
        %1781 = vst [vmem:[#allocation2 + $0x54] sm:$0xff] %v1773
        %1782 = vst [vmem:[#allocation2 + $0x5c] sm:$0xf] %v1774
        %v1783 = vld [vmem:[%s1456] sm:$0xff]
        %v1784 = vld [vmem:[%s1456 + $0x8] sm:$0xff]
        %v1785 = vld [vmem:[%s1456 + $0x10] sm:$0xff]
        %v1786 = vld [vmem:[%s1456 + $0x18] sm:$0xff]
        %1791 = vrot.lane.b32.xlu0 %v1783, 126
        %v1792 = vpop.permute.xlu0 %1791
        %1793 = vrot.lane.b32.xlu0 %v1784, 126
        %v1794 = vpop.permute.xlu0 %1793
        %1795 = vrot.lane.b32.xlu0 %v1785, 126
        %v1796 = vpop.permute.xlu0 %1795
        %1797 = vrot.lane.b32.xlu0 %v1786, 126
        %v1798 = vpop.permute.xlu0 %1797
        %v1799 = vrot.slane %v1792, 4
        %v1800 = vrot.slane %v1794, 4
        %v1801 = vrot.slane %v1796, 4
        %v1802 = vrot.slane %v1798, 4
        %v1803 = vsel %vm305, %v1799, %v1800
        %v1804 = vsel %vm342, %v1792, %v1803
        %v1805 = vsel %vm342, %v1794, %v1800
        %v1806 = vsel %vm305, %v1801, %v1802
        %v1807 = vsel %vm342, %v1796, %v1806
        %v1808 = vsel %vm342, %v1798, %v1802
        %1813 = vst [vmem:[#allocation2 + $0x6c] sm:$0xff] %v1804
        %1814 = vst [vmem:[#allocation2 + $0x74] sm:$0xf] %v1805
        %1815 = vst [vmem:[#allocation2 + $0x84] sm:$0xff] %v1807
        %1816 = vst [vmem:[#allocation2 + $0x8c] sm:$0xf] %v1808
        %v1817 = vld [vmem:[%s1456] sm:$0xff]
        %v1818 = vld [vmem:[%s1456 + $0x8] sm:$0xff]
        %v1819 = vld [vmem:[%s1456 + $0x10] sm:$0xff]
        %v1820 = vld [vmem:[%s1456 + $0x18] sm:$0xff]
        %1825 = vrot.lane.b32.xlu0 %v1817, 111
        %v1826 = vpop.permute.xlu0 %1825
        %1827 = vrot.lane.b32.xlu0 %v1818, 111
        %v1828 = vpop.permute.xlu0 %1827
        %1829 = vrot.lane.b32.xlu0 %v1819, 111
        %v1830 = vpop.permute.xlu0 %1829
        %1831 = vrot.lane.b32.xlu0 %v1820, 111
        %v1832 = vpop.permute.xlu0 %1831
        %v1833 = vrot.slane %v1826, 4
        %v1834 = vrot.slane %v1828, 4
        %v1835 = vrot.slane %v1830, 4
        %v1836 = vrot.slane %v1832, 4
        %v1837 = vsel %vm305, %v1833, %v1834
        %v1838 = vsel %vm377, %v1826, %v1837
        %v1839 = vsel %vm377, %v1828, %v1834
        %v1840 = vsel %vm305, %v1835, %v1836
        %v1841 = vsel %vm377, %v1830, %v1840
        %v1842 = vsel %vm377, %v1832, %v1836
        %1847 = vst [vmem:[#allocation2 + $0x9c] sm:$0xff] %v1838
        %1848 = vst [vmem:[#allocation2 + $0xa4] sm:$0xf] %v1839
        %1849 = vst [vmem:[#allocation2 + $0xb4] sm:$0xff] %v1841
        %1850 = vst [vmem:[#allocation2 + $0xbc] sm:$0xf] %v1842
        %v1851 = vld [vmem:[%s1456] sm:$0xff]
        %v1852 = vld [vmem:[%s1456 + $0x8] sm:$0xff]
        %v1853 = vld [vmem:[%s1456 + $0x10] sm:$0xff]
        %v1854 = vld [vmem:[%s1456 + $0x18] sm:$0xff]
        %1859 = vrot.lane.b32.xlu0 %v1851, 110
        %v1860 = vpop.permute.xlu0 %1859
        %1861 = vrot.lane.b32.xlu0 %v1852, 110
        %v1862 = vpop.permute.xlu0 %1861
        %1863 = vrot.lane.b32.xlu0 %v1853, 110
        %v1864 = vpop.permute.xlu0 %1863
        %1865 = vrot.lane.b32.xlu0 %v1854, 110
        %v1866 = vpop.permute.xlu0 %1865
        %v1867 = vrot.slane %v1860, 4
        %v1868 = vrot.slane %v1862, 4
        %v1869 = vrot.slane %v1864, 4
        %v1870 = vrot.slane %v1866, 4
        %v1871 = vsel %vm305, %v1867, %v1868
        %v1872 = vsel %vm412, %v1860, %v1871
        %v1873 = vsel %vm412, %v1862, %v1868
        %v1874 = vsel %vm305, %v1869, %v1870
        %v1875 = vsel %vm412, %v1864, %v1874
        %v1876 = vsel %vm412, %v1866, %v1870
        %1881 = vst [vmem:[#allocation2 + $0xcc] sm:$0xff] %v1872
        %1882 = vst [vmem:[#allocation2 + $0xd4] sm:$0xf] %v1873
        %1883 = vst [vmem:[#allocation2 + $0xe4] sm:$0xff] %v1875
        %1884 = vst [vmem:[#allocation2 + $0xec] sm:$0xf] %v1876
        %v1885 = vld [vmem:[%s1456] sm:$0xff]
        %v1886 = vld [vmem:[%s1456 + $0x8] sm:$0xff]
        %v1887 = vld [vmem:[%s1456 + $0x10] sm:$0xff]
        %v1888 = vld [vmem:[%s1456 + $0x18] sm:$0xff]
        %1893 = vrot.lane.b32.xlu0 %v1885, 109
        %v1894 = vpop.permute.xlu0 %1893
        %1895 = vrot.lane.b32.xlu0 %v1886, 109
        %v1896 = vpop.permute.xlu0 %1895
        %1897 = vrot.lane.b32.xlu0 %v1887, 109
        %v1898 = vpop.permute.xlu0 %1897
        %1899 = vrot.lane.b32.xlu0 %v1888, 109
        %v1900 = vpop.permute.xlu0 %1899
        %v1901 = vrot.slane %v1894, 4
        %v1902 = vrot.slane %v1896, 4
        %v1903 = vrot.slane %v1898, 4
        %v1904 = vrot.slane %v1900, 4
        %v1905 = vsel %vm305, %v1901, %v1902
        %v1906 = vsel %vm447, %v1894, %v1905
        %v1907 = vsel %vm447, %v1896, %v1902
        %v1908 = vsel %vm305, %v1903, %v1904
        %v1909 = vsel %vm447, %v1898, %v1908
        %v1910 = vsel %vm447, %v1900, %v1904
        %1915 = vst [vmem:[#allocation2 + $0xfc] sm:$0xff] %v1906
        %1916 = vst [vmem:[#allocation2 + $0x104] sm:$0xf] %v1907
        %1917 = vst [vmem:[#allocation2 + $0x114] sm:$0xff] %v1909
        %1918 = vst [vmem:[#allocation2 + $0x11c] sm:$0xf] %v1910
        %v1919 = vld [vmem:[%s1456] sm:$0xff]
        %v1920 = vld [vmem:[%s1456 + $0x8] sm:$0xff]
        %v1921 = vld [vmem:[%s1456 + $0x10] sm:$0xff]
        %v1922 = vld [vmem:[%s1456 + $0x18] sm:$0xff]
        %1927 = vrot.lane.b32.xlu0 %v1919, 94
        %v1928 = vpop.permute.xlu0 %1927
        %1929 = vrot.lane.b32.xlu0 %v1920, 94
        %v1930 = vpop.permute.xlu0 %1929
        %1931 = vrot.lane.b32.xlu0 %v1921, 94
        %v1932 = vpop.permute.xlu0 %1931
        %1933 = vrot.lane.b32.xlu0 %v1922, 94
        %v1934 = vpop.permute.xlu0 %1933
        %v1935 = vrot.slane %v1928, 4
        %v1936 = vrot.slane %v1930, 4
        %v1937 = vrot.slane %v1932, 4
        %v1938 = vrot.slane %v1934, 4
        %v1939 = vsel %vm305, %v1935, %v1936
        %v1940 = vsel %vm482, %v1928, %v1939
        %v1941 = vsel %vm482, %v1930, %v1936
        %v1942 = vsel %vm305, %v1937, %v1938
        %v1943 = vsel %vm482, %v1932, %v1942
        %v1944 = vsel %vm482, %v1934, %v1938
        %1949 = vst [vmem:[#allocation2 + $0x12c] sm:$0xff] %v1940
        %1950 = vst [vmem:[#allocation2 + $0x134] sm:$0xf] %v1941
        %1951 = vst [vmem:[#allocation2 + $0x144] sm:$0xff] %v1943
        %1952 = vst [vmem:[#allocation2 + $0x14c] sm:$0xf] %v1944
        %v1953 = vld [vmem:[%s1456] sm:$0xff]
        %v1954 = vld [vmem:[%s1456 + $0x8] sm:$0xff]
        %v1955 = vld [vmem:[%s1456 + $0x10] sm:$0xff]
        %v1956 = vld [vmem:[%s1456 + $0x18] sm:$0xff]
        %1961 = vrot.lane.b32.xlu0 %v1953, 93
        %v1962 = vpop.permute.xlu0 %1961
        %1963 = vrot.lane.b32.xlu0 %v1954, 93
        %v1964 = vpop.permute.xlu0 %1963
        %1965 = vrot.lane.b32.xlu0 %v1955, 93
        %v1966 = vpop.permute.xlu0 %1965
        %1967 = vrot.lane.b32.xlu0 %v1956, 93
        %v1968 = vpop.permute.xlu0 %1967
        %v1969 = vrot.slane %v1962, 4
        %v1970 = vrot.slane %v1964, 4
        %v1971 = vrot.slane %v1966, 4
        %v1972 = vrot.slane %v1968, 4
        %v1973 = vsel %vm305, %v1969, %v1970
        %v1974 = vsel %vm517, %v1962, %v1973
        %v1975 = vsel %vm517, %v1964, %v1970
        %v1976 = vsel %vm305, %v1971, %v1972
        %v1977 = vsel %vm517, %v1966, %v1976
        %v1978 = vsel %vm517, %v1968, %v1972
        %1983 = vst [vmem:[#allocation2 + $0x15c] sm:$0xff] %v1974
        %1984 = vst [vmem:[#allocation2 + $0x164] sm:$0xf] %v1975
        %1985 = vst [vmem:[#allocation2 + $0x174] sm:$0xff] %v1977
        %1986 = vst [vmem:[#allocation2 + $0x17c] sm:$0xf] %v1978
        %v1987 = vld [vmem:[%s1456] sm:$0xff]
        %v1988 = vld [vmem:[%s1456 + $0x8] sm:$0xff]
        %v1989 = vld [vmem:[%s1456 + $0x10] sm:$0xff]
        %v1990 = vld [vmem:[%s1456 + $0x18] sm:$0xff]
        %1995 = vrot.lane.b32.xlu0 %v1987, 92
        %v1996 = vpop.permute.xlu0 %1995
        %1997 = vrot.lane.b32.xlu0 %v1988, 92
        %v1998 = vpop.permute.xlu0 %1997
        %1999 = vrot.lane.b32.xlu0 %v1989, 92
        %v2000 = vpop.permute.xlu0 %1999
        %2001 = vrot.lane.b32.xlu0 %v1990, 92
        %v2002 = vpop.permute.xlu0 %2001
        %v2003 = vrot.slane %v1996, 4
        %v2004 = vrot.slane %v1998, 4
        %v2005 = vrot.slane %v2000, 4
        %v2006 = vrot.slane %v2002, 4
        %v2007 = vsel %vm305, %v2003, %v2004
        %v2008 = vsel %vm552, %v1996, %v2007
        %v2009 = vsel %vm552, %v1998, %v2004
        %v2010 = vsel %vm305, %v2005, %v2006
        %v2011 = vsel %vm552, %v2000, %v2010
        %v2012 = vsel %vm552, %v2002, %v2006
        %2017 = vst [vmem:[#allocation2 + $0x18c] sm:$0xff] %v2008
        %2018 = vst [vmem:[#allocation2 + $0x194] sm:$0xf] %v2009
        %2019 = vst [vmem:[#allocation2 + $0x1a4] sm:$0xff] %v2011
        %2020 = vst [vmem:[#allocation2 + $0x1ac] sm:$0xf] %v2012
        %v2021 = vld [vmem:[#allocation10] sm:$0xff]
        %v2022 = vld [vmem:[#allocation2] sm:$0xff]
        %v2023 = vld [vmem:[#allocation2 + $0x8] sm:$0xff]
        %v2024 = vld [vmem:[#allocation2 + $0x10] sm:$0xff]
        %v2025 = vld [vmem:[#allocation2 + $0x18] sm:$0xff]
        %v2026 = vld [vmem:[#allocation2 + $0x20] sm:$0xff]
        %v2027 = vld [vmem:[#allocation2 + $0x28] sm:$0xff]
        %v2028 = vld [vmem:[#allocation2 + $0x30] sm:$0xff]
        %v2029 = vld [vmem:[#allocation2 + $0x38] sm:$0xff]
        %v2030 = vld [vmem:[#allocation2 + $0x40] sm:$0xff]
        %v2031 = vld [vmem:[#allocation2 + $0x48] sm:$0xff]
        %v2032 = vld [vmem:[#allocation2 + $0x50] sm:$0xff]
        %v2033 = vld [vmem:[#allocation2 + $0x58] sm:$0xff]
        %v2034 = vld [vmem:[#allocation2 + $0x60] sm:$0xff]
        %v2035 = vld [vmem:[#allocation2 + $0x68] sm:$0xff]
        %v2036 = vld [vmem:[#allocation2 + $0x70] sm:$0xff]
        %v2037 = vld [vmem:[#allocation2 + $0x78] sm:$0xff]
        %v2038 = vld [vmem:[#allocation2 + $0x80] sm:$0xff]
        %v2039 = vld [vmem:[#allocation2 + $0x88] sm:$0xff]
        %v2040 = vld [vmem:[#allocation2 + $0x90] sm:$0xff]
        %v2041 = vld [vmem:[#allocation2 + $0x98] sm:$0xff]
        %v2042 = vld [vmem:[#allocation2 + $0xa0] sm:$0xff]
        %v2043 = vld [vmem:[#allocation2 + $0xa8] sm:$0xff]
        %v2044 = vld [vmem:[#allocation2 + $0xb0] sm:$0xff]
        %v2045 = vld [vmem:[#allocation2 + $0xb8] sm:$0xff]
        %v2046 = vld [vmem:[#allocation2 + $0xc0] sm:$0xff]
        %v2047 = vld [vmem:[#allocation2 + $0xc8] sm:$0xff]
        %v2048 = vld [vmem:[#allocation2 + $0xd0] sm:$0xff]
        %v2049 = vld [vmem:[#allocation2 + $0xd8] sm:$0xff]
        %v2050 = vld [vmem:[#allocation2 + $0xe0] sm:$0xff]
        %v2051 = vld [vmem:[#allocation2 + $0xe8] sm:$0xff]
        %v2052 = vld [vmem:[#allocation2 + $0xf0] sm:$0xff]
        %v2053 = vld [vmem:[#allocation2 + $0xf8] sm:$0xff]
        %v2054 = vld [vmem:[#allocation2 + $0x100] sm:$0xff]
        %v2055 = vld [vmem:[#allocation2 + $0x108] sm:$0xff]
        %v2056 = vld [vmem:[#allocation2 + $0x110] sm:$0xff]
        %v2057 = vld [vmem:[#allocation2 + $0x118] sm:$0xff]
        %v2058 = vld [vmem:[#allocation2 + $0x120] sm:$0xff]
        %v2059 = vld [vmem:[#allocation2 + $0x128] sm:$0xff]
        %v2060 = vld [vmem:[#allocation2 + $0x130] sm:$0xff]
        %v2061 = vld [vmem:[#allocation2 + $0x138] sm:$0xff]
        %v2062 = vld [vmem:[#allocation2 + $0x140] sm:$0xff]
        %v2063 = vld [vmem:[#allocation2 + $0x148] sm:$0xff]
        %v2064 = vld [vmem:[#allocation2 + $0x150] sm:$0xff]
        %v2065 = vld [vmem:[#allocation2 + $0x158] sm:$0xff]
        %v2066 = vld [vmem:[#allocation2 + $0x160] sm:$0xff]
        %v2067 = vld [vmem:[#allocation2 + $0x168] sm:$0xff]
        %v2068 = vld [vmem:[#allocation2 + $0x170] sm:$0xff]
        %v2069 = vld [vmem:[#allocation2 + $0x178] sm:$0xff]
        %v2070 = vld [vmem:[#allocation2 + $0x180] sm:$0xff]
        %v2071 = vld [vmem:[#allocation2 + $0x188] sm:$0xff]
        %v2072 = vld [vmem:[#allocation2 + $0x190] sm:$0xff]
        %v2073 = vld [vmem:[#allocation2 + $0x198] sm:$0xff]
        %v2074 = vld [vmem:[#allocation2 + $0x1a0] sm:$0xff]
        %v2075 = vld [vmem:[#allocation2 + $0x1a8] sm:$0xff]
        %v2077 = vunpack.c.l.b16 %v2021
        %v2078 = vunpack.c.h.b16 %v2021
        %v2079 = vpack.c.b16 %v2077, %v2077
        %v2080 = vpack.c.b16 %v2078, %v2078
        %v2136 = vunpack.c.l.b16 %v2022
        %v2137 = vunpack.c.h.b16 %v2022
        %v2138 = vunpack.c.l.b16 %v2023
        %v2139 = vunpack.c.h.b16 %v2023
        %v2140 = vunpack.c.l.b16 %v2024
        %v2141 = vunpack.c.h.b16 %v2024
        %v2142 = vunpack.c.l.b16 %v2025
        %v2143 = vunpack.c.h.b16 %v2025
        %v2144 = vunpack.c.l.b16 %v2026
        %v2145 = vunpack.c.h.b16 %v2026
        %v2146 = vunpack.c.l.b16 %v2027
        %v2147 = vunpack.c.h.b16 %v2027
        %v2148 = vunpack.c.l.b16 %v2028
        %v2149 = vunpack.c.h.b16 %v2028
        %v2150 = vunpack.c.l.b16 %v2029
        %v2151 = vunpack.c.h.b16 %v2029
        %v2152 = vunpack.c.l.b16 %v2030
        %v2153 = vunpack.c.h.b16 %v2030
        %v2154 = vunpack.c.l.b16 %v2031
        %v2155 = vunpack.c.h.b16 %v2031
        %v2156 = vunpack.c.l.b16 %v2032
        %v2157 = vunpack.c.h.b16 %v2032
        %v2158 = vunpack.c.l.b16 %v2033
        %v2159 = vunpack.c.h.b16 %v2033
        %v2160 = vunpack.c.l.b16 %v2034
        %v2161 = vunpack.c.h.b16 %v2034
        %v2162 = vunpack.c.l.b16 %v2035
        %v2163 = vunpack.c.h.b16 %v2035
        %v2164 = vunpack.c.l.b16 %v2036
        %v2165 = vunpack.c.h.b16 %v2036
        %v2166 = vunpack.c.l.b16 %v2037
        %v2167 = vunpack.c.h.b16 %v2037
        %v2168 = vunpack.c.l.b16 %v2038
        %v2169 = vunpack.c.h.b16 %v2038
        %v2170 = vunpack.c.l.b16 %v2039
        %v2171 = vunpack.c.h.b16 %v2039
        %v2172 = vunpack.c.l.b16 %v2040
        %v2173 = vunpack.c.h.b16 %v2040
        %v2174 = vunpack.c.l.b16 %v2041
        %v2175 = vunpack.c.h.b16 %v2041
        %v2176 = vunpack.c.l.b16 %v2042
        %v2177 = vunpack.c.h.b16 %v2042
        %v2178 = vunpack.c.l.b16 %v2043
        %v2179 = vunpack.c.h.b16 %v2043
        %v2180 = vunpack.c.l.b16 %v2044
        %v2181 = vunpack.c.h.b16 %v2044
        %v2182 = vunpack.c.l.b16 %v2045
        %v2183 = vunpack.c.h.b16 %v2045
        %v2184 = vunpack.c.l.b16 %v2046
        %v2185 = vunpack.c.h.b16 %v2046
        %v2186 = vunpack.c.l.b16 %v2047
        %v2187 = vunpack.c.h.b16 %v2047
        %v2188 = vunpack.c.l.b16 %v2048
        %v2189 = vunpack.c.h.b16 %v2048
        %v2190 = vunpack.c.l.b16 %v2049
        %v2191 = vunpack.c.h.b16 %v2049
        %v2192 = vunpack.c.l.b16 %v2050
        %v2193 = vunpack.c.h.b16 %v2050
        %v2194 = vunpack.c.l.b16 %v2051
        %v2195 = vunpack.c.h.b16 %v2051
        %v2196 = vunpack.c.l.b16 %v2052
        %v2197 = vunpack.c.h.b16 %v2052
        %v2198 = vunpack.c.l.b16 %v2053
        %v2199 = vunpack.c.h.b16 %v2053
        %v2200 = vunpack.c.l.b16 %v2054
        %v2201 = vunpack.c.h.b16 %v2054
        %v2202 = vunpack.c.l.b16 %v2055
        %v2203 = vunpack.c.h.b16 %v2055
        %v2204 = vunpack.c.l.b16 %v2056
        %v2205 = vunpack.c.h.b16 %v2056
        %v2206 = vunpack.c.l.b16 %v2057
        %v2207 = vunpack.c.h.b16 %v2057
        %v2208 = vunpack.c.l.b16 %v2058
        %v2209 = vunpack.c.h.b16 %v2058
        %v2210 = vunpack.c.l.b16 %v2059
        %v2211 = vunpack.c.h.b16 %v2059
        %v2212 = vunpack.c.l.b16 %v2060
        %v2213 = vunpack.c.h.b16 %v2060
        %v2214 = vunpack.c.l.b16 %v2061
        %v2215 = vunpack.c.h.b16 %v2061
        %v2216 = vunpack.c.l.b16 %v2062
        %v2217 = vunpack.c.h.b16 %v2062
        %v2218 = vunpack.c.l.b16 %v2063
        %v2219 = vunpack.c.h.b16 %v2063
        %v2220 = vunpack.c.l.b16 %v2064
        %v2221 = vunpack.c.h.b16 %v2064
        %v2222 = vunpack.c.l.b16 %v2065
        %v2223 = vunpack.c.h.b16 %v2065
        %v2224 = vunpack.c.l.b16 %v2066
        %v2225 = vunpack.c.h.b16 %v2066
        %v2226 = vunpack.c.l.b16 %v2067
        %v2227 = vunpack.c.h.b16 %v2067
        %v2228 = vunpack.c.l.b16 %v2068
        %v2229 = vunpack.c.h.b16 %v2068
        %v2230 = vunpack.c.l.b16 %v2069
        %v2231 = vunpack.c.h.b16 %v2069
        %v2232 = vunpack.c.l.b16 %v2070
        %v2233 = vunpack.c.h.b16 %v2070
        %v2234 = vunpack.c.l.b16 %v2071
        %v2235 = vunpack.c.h.b16 %v2071
        %v2236 = vunpack.c.l.b16 %v2072
        %v2237 = vunpack.c.h.b16 %v2072
        %v2238 = vunpack.c.l.b16 %v2073
        %v2239 = vunpack.c.h.b16 %v2073
        %v2240 = vunpack.c.l.b16 %v2074
        %v2241 = vunpack.c.h.b16 %v2074
        %v2242 = vunpack.c.l.b16 %v2075
        %v2243 = vunpack.c.h.b16 %v2075
        %v2244 = vpack.c.b16 %v2142, %v2136
        %v2245 = vpack.c.b16 %v2143, %v2137
        %v2246 = vpack.c.b16 %v2144, %v2138
        %v2247 = vpack.c.b16 %v2145, %v2139
        %v2248 = vpack.c.b16 %v2146, %v2140
        %v2249 = vpack.c.b16 %v2147, %v2141
        %v2250 = vpack.c.b16 %v2154, %v2148
        %v2251 = vpack.c.b16 %v2155, %v2149
        %v2252 = vpack.c.b16 %v2156, %v2150
        %v2253 = vpack.c.b16 %v2157, %v2151
        %v2254 = vpack.c.b16 %v2158, %v2152
        %v2255 = vpack.c.b16 %v2159, %v2153
        %v2256 = vpack.c.b16 %v2166, %v2160
        %v2257 = vpack.c.b16 %v2167, %v2161
        %v2258 = vpack.c.b16 %v2168, %v2162
        %v2259 = vpack.c.b16 %v2169, %v2163
        %v2260 = vpack.c.b16 %v2170, %v2164
        %v2261 = vpack.c.b16 %v2171, %v2165
        %v2262 = vpack.c.b16 %v2178, %v2172
        %v2263 = vpack.c.b16 %v2179, %v2173
        %v2264 = vpack.c.b16 %v2180, %v2174
        %v2265 = vpack.c.b16 %v2181, %v2175
        %v2266 = vpack.c.b16 %v2182, %v2176
        %v2267 = vpack.c.b16 %v2183, %v2177
        %v2268 = vpack.c.b16 %v2190, %v2184
        %v2269 = vpack.c.b16 %v2191, %v2185
        %v2270 = vpack.c.b16 %v2192, %v2186
        %v2271 = vpack.c.b16 %v2193, %v2187
        %v2272 = vpack.c.b16 %v2194, %v2188
        %v2273 = vpack.c.b16 %v2195, %v2189
        %v2274 = vpack.c.b16 %v2202, %v2196
        %v2275 = vpack.c.b16 %v2203, %v2197
        %v2276 = vpack.c.b16 %v2204, %v2198
        %v2277 = vpack.c.b16 %v2205, %v2199
        %v2278 = vpack.c.b16 %v2206, %v2200
        %v2279 = vpack.c.b16 %v2207, %v2201
        %v2280 = vpack.c.b16 %v2214, %v2208
        %v2281 = vpack.c.b16 %v2215, %v2209
        %v2282 = vpack.c.b16 %v2216, %v2210
        %v2283 = vpack.c.b16 %v2217, %v2211
        %v2284 = vpack.c.b16 %v2218, %v2212
        %v2285 = vpack.c.b16 %v2219, %v2213
        %v2286 = vpack.c.b16 %v2226, %v2220
        %v2287 = vpack.c.b16 %v2227, %v2221
        %v2288 = vpack.c.b16 %v2228, %v2222
        %v2289 = vpack.c.b16 %v2229, %v2223
        %v2290 = vpack.c.b16 %v2230, %v2224
        %v2291 = vpack.c.b16 %v2231, %v2225
        %v2292 = vpack.c.b16 %v2238, %v2232
        %v2293 = vpack.c.b16 %v2239, %v2233
        %v2294 = vpack.c.b16 %v2240, %v2234
        %v2295 = vpack.c.b16 %v2241, %v2235
        %v2296 = vpack.c.b16 %v2242, %v2236
        %v2297 = vpack.c.b16 %v2243, %v2237
        %v2353 = vsel %vm1182, %v2080, 0
        %2355 = vmatpush.bf16.msra.mxu0 %v2286
        %2356 = vmatpush.bf16.msra.mxu0 %v2280
        %2357 = vmatpush.bf16.msra.mxu0 %v2274
        %2358 = vmatpush.bf16.msra.mxu0 %v2268
        %2359 = vmatpush.bf16.msra.mxu0 %v2262
        %2360 = vmatpush.bf16.msra.mxu0 %v2256
        %2361 = vmatpush.bf16.msra.mxu0 %v2250
        %2362 = vmatpush.bf16.msra.mxu0 %v2244
        %2363 = vmatmul.bf16.gmra.mxu0 %v2079
        %v2364 = vpop.f32.mrf.mxu0
        %v2365 = vadd.f32 0.0, %v2364
        %v2366 = vpop.f32.mrf.mxu0
        %2367 = vdwg.mxu0
        %2368 = vmatpush.bf16.msra.mxu0 0
        %2369 = vmatpush.bf16.msra.mxu0 0
        %2370 = vmatpush.bf16.msra.mxu0 0
        %2371 = vmatpush.bf16.msra.mxu0 0
        %2372 = vmatpush.bf16.msra.mxu0 0
        %2373 = vmatpush.bf16.msra.mxu0 0
        %2374 = vmatpush.bf16.msra.mxu0 0
        %2375 = vmatpush.bf16.msra.mxu0 %v2292
        %2376 = vmatmul.bf16.gmra.mxu0 %v2353
        %v2377 = vpop.f32.mrf.mxu0
        %v2378 = vadd.f32 %v2365, %v2377
        %v2379 = vpop.f32.mrf.mxu0
        %2380 = vdwg.mxu0
        %2381 = vmatpush.bf16.msra.mxu0 %v2287
        %2382 = vmatpush.bf16.msra.mxu0 %v2281
        %2383 = vmatpush.bf16.msra.mxu0 %v2275
        %2384 = vmatpush.bf16.msra.mxu0 %v2269
        %2385 = vmatpush.bf16.msra.mxu0 %v2263
        %2386 = vmatpush.bf16.msra.mxu0 %v2257
        %2387 = vmatpush.bf16.msra.mxu0 %v2251
        %2388 = vmatpush.bf16.msra.mxu0 %v2245
        %2389 = vmatmul.bf16.gmra.mxu0 %v2079
        %v2390 = vpop.f32.mrf.mxu0
        %v2391 = vadd.f32 0.0, %v2390
        %v2392 = vpop.f32.mrf.mxu0
        %2393 = vdwg.mxu0
        %2394 = vmatpush.bf16.msra.mxu0 0
        %2395 = vmatpush.bf16.msra.mxu0 0
        %2396 = vmatpush.bf16.msra.mxu0 0
        %2397 = vmatpush.bf16.msra.mxu0 0
        %2398 = vmatpush.bf16.msra.mxu0 0
        %2399 = vmatpush.bf16.msra.mxu0 0
        %2400 = vmatpush.bf16.msra.mxu0 0
        %2401 = vmatpush.bf16.msra.mxu0 %v2293
        %2402 = vmatmul.bf16.gmra.mxu0 %v2353
        %v2403 = vpop.f32.mrf.mxu0
        %v2404 = vadd.f32 %v2391, %v2403
        %v2405 = vpop.f32.mrf.mxu0
        %2406 = vdwg.mxu0
        %2407 = vmatpush.bf16.msra.mxu0 %v2288
        %2408 = vmatpush.bf16.msra.mxu0 %v2282
        %2409 = vmatpush.bf16.msra.mxu0 %v2276
        %2410 = vmatpush.bf16.msra.mxu0 %v2270
        %2411 = vmatpush.bf16.msra.mxu0 %v2264
        %2412 = vmatpush.bf16.msra.mxu0 %v2258
        %2413 = vmatpush.bf16.msra.mxu0 %v2252
        %2414 = vmatpush.bf16.msra.mxu0 %v2246
        %2415 = vmatmul.bf16.gmra.mxu0 %v2079
        %v2416 = vpop.f32.mrf.mxu0
        %v2417 = vadd.f32 0.0, %v2416
        %v2418 = vpop.f32.mrf.mxu0
        %2419 = vdwg.mxu0
        %2420 = vmatpush.bf16.msra.mxu0 0
        %2421 = vmatpush.bf16.msra.mxu0 0
        %2422 = vmatpush.bf16.msra.mxu0 0
        %2423 = vmatpush.bf16.msra.mxu0 0
        %2424 = vmatpush.bf16.msra.mxu0 0
        %2425 = vmatpush.bf16.msra.mxu0 0
        %2426 = vmatpush.bf16.msra.mxu0 0
        %2427 = vmatpush.bf16.msra.mxu0 %v2294
        %2428 = vmatmul.bf16.gmra.mxu0 %v2353
        %v2429 = vpop.f32.mrf.mxu0
        %v2430 = vadd.f32 %v2417, %v2429
        %v2431 = vpop.f32.mrf.mxu0
        %2432 = vdwg.mxu0
        %2433 = vmatpush.bf16.msra.mxu0 %v2289
        %2434 = vmatpush.bf16.msra.mxu0 %v2283
        %2435 = vmatpush.bf16.msra.mxu0 %v2277
        %2436 = vmatpush.bf16.msra.mxu0 %v2271
        %2437 = vmatpush.bf16.msra.mxu0 %v2265
        %2438 = vmatpush.bf16.msra.mxu0 %v2259
        %2439 = vmatpush.bf16.msra.mxu0 %v2253
        %2440 = vmatpush.bf16.msra.mxu0 %v2247
        %2441 = vmatmul.bf16.gmra.mxu0 %v2079
        %v2442 = vpop.f32.mrf.mxu0
        %v2443 = vadd.f32 0.0, %v2442
        %v2444 = vpop.f32.mrf.mxu0
        %2445 = vdwg.mxu0
        %2446 = vmatpush.bf16.msra.mxu0 0
        %2447 = vmatpush.bf16.msra.mxu0 0
        %2448 = vmatpush.bf16.msra.mxu0 0
        %2449 = vmatpush.bf16.msra.mxu0 0
        %2450 = vmatpush.bf16.msra.mxu0 0
        %2451 = vmatpush.bf16.msra.mxu0 0
        %2452 = vmatpush.bf16.msra.mxu0 0
        %2453 = vmatpush.bf16.msra.mxu0 %v2295
        %2454 = vmatmul.bf16.gmra.mxu0 %v2353
        %v2455 = vpop.f32.mrf.mxu0
        %v2456 = vadd.f32 %v2443, %v2455
        %v2457 = vpop.f32.mrf.mxu0
        %2458 = vdwg.mxu0
        %2459 = vmatpush.bf16.msra.mxu0 %v2290
        %2460 = vmatpush.bf16.msra.mxu0 %v2284
        %2461 = vmatpush.bf16.msra.mxu0 %v2278
        %2462 = vmatpush.bf16.msra.mxu0 %v2272
        %2463 = vmatpush.bf16.msra.mxu0 %v2266
        %2464 = vmatpush.bf16.msra.mxu0 %v2260
        %2465 = vmatpush.bf16.msra.mxu0 %v2254
        %2466 = vmatpush.bf16.msra.mxu0 %v2248
        %2467 = vmatmul.bf16.gmra.mxu0 %v2079
        %v2468 = vpop.f32.mrf.mxu0
        %v2469 = vadd.f32 0.0, %v2468
        %v2470 = vpop.f32.mrf.mxu0
        %2471 = vdwg.mxu0
        %2472 = vmatpush.bf16.msra.mxu0 0
        %2473 = vmatpush.bf16.msra.mxu0 0
        %2474 = vmatpush.bf16.msra.mxu0 0
        %2475 = vmatpush.bf16.msra.mxu0 0
        %2476 = vmatpush.bf16.msra.mxu0 0
        %2477 = vmatpush.bf16.msra.mxu0 0
        %2478 = vmatpush.bf16.msra.mxu0 0
        %2479 = vmatpush.bf16.msra.mxu0 %v2296
        %2480 = vmatmul.bf16.gmra.mxu0 %v2353
        %v2481 = vpop.f32.mrf.mxu0
        %v2482 = vadd.f32 %v2469, %v2481
        %v2483 = vpop.f32.mrf.mxu0
        %2484 = vdwg.mxu0
        %2485 = vmatpush.bf16.msra.mxu0 %v2291
        %2486 = vmatpush.bf16.msra.mxu0 %v2285
        %2487 = vmatpush.bf16.msra.mxu0 %v2279
        %2488 = vmatpush.bf16.msra.mxu0 %v2273
        %2489 = vmatpush.bf16.msra.mxu0 %v2267
        %2490 = vmatpush.bf16.msra.mxu0 %v2261
        %2491 = vmatpush.bf16.msra.mxu0 %v2255
        %2492 = vmatpush.bf16.msra.mxu0 %v2249
        %2493 = vmatmul.bf16.gmra.mxu0 %v2079
        %v2494 = vpop.f32.mrf.mxu0
        %v2495 = vadd.f32 0.0, %v2494
        %v2496 = vpop.f32.mrf.mxu0
        %2497 = vdwg.mxu0
        %2498 = vmatpush.bf16.msra.mxu0 0
        %2499 = vmatpush.bf16.msra.mxu0 0
        %2500 = vmatpush.bf16.msra.mxu0 0
        %2501 = vmatpush.bf16.msra.mxu0 0
        %2502 = vmatpush.bf16.msra.mxu0 0
        %2503 = vmatpush.bf16.msra.mxu0 0
        %2504 = vmatpush.bf16.msra.mxu0 0
        %2505 = vmatpush.bf16.msra.mxu0 %v2297
        %2506 = vmatmul.bf16.gmra.mxu0 %v2353
        %v2507 = vpop.f32.mrf.mxu0
        %v2508 = vadd.f32 %v2495, %v2507
        %v2509 = vpop.f32.mrf.mxu0
        %2510 = vdwg.mxu0
        %2511 = vst [vmem:[%s264] sm:$0xff] %v2378
        %2512 = vst [vmem:[%s264 + $0x8] sm:$0xff] %v2404
        %2513 = vst [vmem:[%s264 + $0x10] sm:$0xff] %v2430
        %s2514 = scalar_lea.vmem %s264, 24 [#allocation12]
        %2515 = vst [vmem:[%s2514] sm:$0xff] %v2456
        %2516 = vst [vmem:[%s2514 + $0x8] sm:$0xff] %v2482
        %2517 = vst [vmem:[%s2514 + $0x10] sm:$0xff] %v2508
        %s2518 = sand.u32 %s120, 1
        %s2519 = scalar_lea.sflag [#allocation6], %s2518
        %s2520 = sand.u32 %s120, 1
        %s2521 = smul.addr %s2520, 48
        %s2522 = scalar_lea.vmem [#allocation12], %s2521
        // Predicated region
        $region53: #{tpu_custom_call.1} parent=35 // pred_check
          %p2523 = pneg %p130
        $region54: #{tpu_custom_call.1} parent=35 // pred_check_branch
          %2525 = sbr.rel (%p2523) target = $region56
        $region55: #{tpu_custom_call.1} parent=35 // pred_region
          %s2526 = smul.u32 2, %s23
          %2528 = vsyncadd %s2519, 0
          %s2529 = smul.addr %s2526, 3
          %s2530 = smul.addr %s2529, 8
          %s2531 = scalar_lea.hbm %s4, %s2530
          %s2532 = sshll.u32 %s2522, 4
          %s2533 = int_to_ptr.vmem [resolvable:$true] %s2532
          %s2534 = sshll.u32 %s2531, 4
          %s2535 = int_to_ptr.hbm [resolvable:$true] %s2534
          %2540 = dma.vmem_to_hbm [thread:$0]  %s2533, 768, %s2535, %s2519, 384, 384, 24
        $region56: #{tpu_custom_call.1} parent=35 // pred_fallthru
          _
      $region36: #{tpu_custom_call.1} parent=5 // pred_fallthru
        _
      %p2541 = scmp.le.s32.totalorder 2, %s18
      // Predicated region
      $region57: #{tpu_custom_call.1} parent=5 // pred_check
        %p2542 = pneg %p2541
      $region58: #{tpu_custom_call.1} parent=5 // pred_check_branch
        %2544 = sbr.rel (%p2542) target = $region60
      $region59: #{tpu_custom_call.1} parent=5 // pred_region
        %s2545 = ssub.s32 %s18, 2
        // Predicated region
        $region61: #{tpu_custom_call.1} parent=59 // pred_check
          %p2546 = pneg %p136
        $region62: #{tpu_custom_call.1} parent=59 // pred_check_branch
          %2548 = sbr.rel (%p2546) target = $region64
        $region63: #{tpu_custom_call.1} parent=59 // pred_region
          %s2549 = sand.u32 %s121, 1
          %s2550 = scalar_lea.sflag [#allocation6], %s2549
          %s2551 = sand.u32 %s121, 1
          %s2552 = smul.addr %s2551, 48
          %s2553 = scalar_lea.vmem [#allocation12], %s2552
          %2555 = dma.done %s2550, 768
        $region64: #{tpu_custom_call.1} parent=59 // pred_fallthru
          _
      $region60: #{tpu_custom_call.1} parent=5 // pred_fallthru
        _
    $region6: #{tpu_custom_call.1} parent=1 // loop_footer
      %s22 = sadd.s32 1, %s18
    $region7: #{tpu_custom_call.1} parent=1 // loop_footer_branch
      %17 = sbr.rel target = $region3
    $region8: #{tpu_custom_call.1} parent=1 // loop_exit
      _
    %2556 = vsyncpa [#allocation5], 1
    %s2557 = scalar_lea.sflag [#allocation5], 1
    %2558 = vsyncpa %s2557, 1
    %2559 = vsyncpa [#allocation8], 1
    %2560 = vsyncpa [#allocation11], 1
    %2561 = vsyncpa [#allocation6], 1
    %s2562 = scalar_lea.sflag [#allocation6], 1
    %2563 = vsyncpa %s2562, 1

</llo_original>
